<compile_context>
chip_gen: v7x
topology: tpu7x:2x2x1
jax: 0.10.0
libtpu: 0.0.40
codegen_flags: <defaults>
</compile_context>

<pallas_src>
import math
import functools

import jax
import jax.numpy as jnp
from jax.experimental import pallas as pl
from jax.experimental.pallas import tpu as pltpu


def _round_up(x, m):
    return ((x + m - 1) // m) * m


def _pick_block_b(B, cap=16):
    """Amortize per-grid-step overhead but keep >=2 steps when B allows (v7x 2 TCs)."""
    if B <= 2:
        return 1
    target = max(1, min(cap, B // 2))
    for bb in range(target, 0, -1):
        if B % bb == 0:
            return bb
    return 1


def _mha_kernel(q_ref, k_ref, v_ref, mask_ref,
                wq_ref, wk_ref, wv_ref, b_in_ref,
                wo_ref, bo_ref,
                o_ref, attn_ref, *, nhead):
    """One grid step == block_b batch elements. Everything fits in VMEM."""
    Bb, Lq, E = q_ref.shape
    Sp = k_ref.shape[1]
    hd = E // nhead

    # Pre-transposed weights (bf16), so every matmul is plain x @ w.
    wq = wq_ref[...]            # [E, E]   (query scale already folded in)
    wk = wk_ref[...]            # [E, E]
    wv = wv_ref[...]            # [E, E]
    wo = wo_ref[...]            # [E, out_pad]  zero-padded to lane width
    bq = b_in_ref[0:1, :]       # [1, E] f32 (scale folded in)
    bk = b_in_ref[1:2, :]       # [1, E] f32
    bv = b_in_ref[2:3, :]       # [1, E] f32
    bo = bo_ref[...]            # [1, out_pad] f32

    neg = jnp.float32(-1e9)

    # ---- in-projection: full-width matmuls, then build one (Bb*nhead)-batched
    # set of head tensors for a single scores einsum + a single context einsum.
    q_heads, k_heads, v_heads, bias_heads = [], [], [], []
    for b in range(Bb):                                     # static unroll
        qp = jnp.dot(q_ref[b], wq, preferred_element_type=jnp.float32) + bq   # [Lq, E]
        kp = jnp.dot(k_ref[b], wk, preferred_element_type=jnp.float32) + bk   # [Sp, E]
        vp = jnp.dot(v_ref[b], wv, preferred_element_type=jnp.float32) + bv   # [Sp, E]
        qp = qp.astype(jnp.bfloat16)
        kp = kp.astype(jnp.bfloat16)
        vp = vp.astype(jnp.bfloat16)
        bias_b = mask_ref[b] * neg                                             # [1, Sp] f32
        for h in range(nhead):
            sl = slice(h * hd, (h + 1) * hd)
            q_heads.append(qp[None, :, sl])                 # [1, Lq, hd]
            k_heads.append(kp[None, :, sl])                 # [1, Sp, hd]
            v_heads.append(vp[None, :, sl])                 # [1, Sp, hd]
            bias_heads.append(bias_b[None])                 # [1, 1, Sp]

    qz = jnp.concatenate(q_heads, axis=0)                   # [Z, Lq, hd]  (Z = Bb*nhead)
    kz = jnp.concatenate(k_heads, axis=0)                   # [Z, Sp, hd]
    vz = jnp.concatenate(v_heads, axis=0)                   # [Z, Sp, hd]
    bias_z = jnp.concatenate(bias_heads, axis=0)            # [Z, 1,  Sp]

    # ---- attention (single batched matmul for scores, single for context) ----
    s = jnp.einsum('zqd,zkd->zqk', qz, kz,
                   preferred_element_type=jnp.float32)      # [Z, Lq, Sp] f32
    s = s + bias_z                                          # broadcast over Lq
    s = s - jnp.max(s, axis=-1, keepdims=True)
    p = jnp.exp(s)
    p = p * pl.reciprocal(jnp.sum(p, axis=-1, keepdims=True), approx=True)

    ctx_z = jnp.einsum('zqk,zkd->zqd', p.astype(jnp.bfloat16), vz,
                       preferred_element_type=jnp.float32)  # [Z, Lq, hd] f32

    # ---- out-projection + head-averaged attention, lane-dense stores ---------
    inv_h = jnp.float32(1.0 / nhead)
    for b in range(Bb):
        z0 = b * nhead
        ctx_b = jnp.concatenate([ctx_z[z0 + h] for h in range(nhead)], axis=-1)  # [Lq, E]
        out_b = jnp.dot(ctx_b.astype(jnp.bfloat16), wo,
                        preferred_element_type=jnp.float32) + bo                 # [Lq, out_pad]
        o_ref[b] = out_b.astype(o_ref.dtype)

        attn_b = p[z0]
        for h in range(1, nhead):
            attn_b = attn_b + p[z0 + h]
        attn_ref[b] = (attn_b * inv_h).astype(attn_ref.dtype)


@functools.partial(jax.jit, static_argnames=("num_agents", "nhead", "block_b"))
def multihead_attention_global_head(inputs, type_embedding, mask, num_agents, params,
                                    nhead, block_b=None):
    """Mirrors MultiheadAttentionGlobalHeadRecognition.forward (inference).

    inputs, type_embedding: [B, S, d_model]   (batch-first)
    mask: [B, S] bool, True => key is ignored (key_padding_mask semantics)
    Returns (outputs [Lq, B, out_dim], attns [B, Lq, S]) with Lq = num_agents.
    """
    B, S, E = inputs.shape
    out_dim = params["w_out"].shape[0]
    assert E % nhead == 0
    hd = E // nhead

    # Batch-major directly (no [S,B,E] transpose round trip).
    q = inputs[:, 1:num_agents + 1, :]               # [B, Lq, E]
    k = inputs + type_embedding                      # [B, S,  E]
    v = inputs                                       # [B, S,  E]
    Lq = q.shape[1]

    # Lane-dense padding of the key axis and the output feature axis.
    Sp = _round_up(S, 128)
    out_pad = _round_up(out_dim, 128)
    pad_s = Sp - S

    q = q.astype(jnp.bfloat16)
    k = jnp.pad(k, ((0, 0), (0, pad_s), (0, 0))).astype(jnp.bfloat16)
    v = jnp.pad(v, ((0, 0), (0, pad_s), (0, 0))).astype(jnp.bfloat16)
    # 0.0 = keep, 1.0 = masked; padded keys are masked.
    mask_f = jnp.pad(mask.astype(jnp.float32), ((0, 0), (0, pad_s)),
                     constant_values=1.0).reshape(B, 1, Sp)

    # Pre-transpose / pre-split weights host-side; fold the query scale in.
    scale = 1.0 / math.sqrt(hd)
    w_in = params["w_in"].astype(jnp.float32)        # [3E, E]
    b_in = params["b_in"].astype(jnp.float32)        # [3E]
    wq_t = (w_in[0:E].T * scale).astype(jnp.bfloat16)          # [E, E]
    wk_t = w_in[E:2 * E].T.astype(jnp.bfloat16)                # [E, E]
    wv_t = w_in[2 * E:3 * E].T.astype(jnp.bfloat16)            # [E, E]
    b3 = jnp.stack([b_in[0:E] * scale, b_in[E:2 * E], b_in[2 * E:3 * E]], axis=0)  # [3, E] f32

    w_out = params["w_out"].astype(jnp.float32)      # [out_dim, E]
    wo_t = jnp.zeros((E, out_pad), jnp.bfloat16).at[:, :out_dim].set(
        w_out.T.astype(jnp.bfloat16))
    bo = jnp.zeros((1, out_pad), jnp.float32).at[:, :out_dim].set(
        params["b_out"].astype(jnp.float32))

    if block_b is None:
        block_b = _pick_block_b(B)
    grid = (B // block_b,)

    kernel = functools.partial(_mha_kernel, nhead=nhead)

    o, attn = pl.pallas_call(
        kernel,
        out_shape=(
            jax.ShapeDtypeStruct((B, Lq, out_pad), jnp.float32),
            jax.ShapeDtypeStruct((B, Lq, Sp), jnp.float32),
        ),
        grid=grid,
        in_specs=[
            pl.BlockSpec((block_b, Lq, E), lambda b: (b, 0, 0)),    # q
            pl.BlockSpec((block_b, Sp, E), lambda b: (b, 0, 0)),    # k (padded)
            pl.BlockSpec((block_b, Sp, E), lambda b: (b, 0, 0)),    # v (padded)
            pl.BlockSpec((block_b, 1, Sp), lambda b: (b, 0, 0)),    # 0/1 mask
            pl.BlockSpec((E, E), lambda b: (0, 0)),                 # Wq^T (scaled)
            pl.BlockSpec((E, E), lambda b: (0, 0)),                 # Wk^T
            pl.BlockSpec((E, E), lambda b: (0, 0)),                 # Wv^T
            pl.BlockSpec((3, E), lambda b: (0, 0)),                 # biases q/k/v
            pl.BlockSpec((E, out_pad), lambda b: (0, 0)),           # Wo^T (lane-padded)
            pl.BlockSpec((1, out_pad), lambda b: (0, 0)),           # bo (lane-padded)
        ],
        out_specs=(
            pl.BlockSpec((block_b, Lq, out_pad), lambda b: (b, 0, 0)),
            pl.BlockSpec((block_b, Lq, Sp), lambda b: (b, 0, 0)),
        ),
        compiler_params=pltpu.CompilerParams(dimension_semantics=("parallel",)),
    )(q, k, v, mask_f, wq_t, wk_t, wv_t, b3, wo_t, bo)

    outputs = jnp.transpose(o[:, :, :out_dim], (1, 0, 2))   # [Lq, B, out_dim] (seq-first)
    attns = attn[:, :, :S]                                  # [B, Lq, S] (avg over heads)
    return outputs, attns


def init_params(key, d_model, out_dim):
    k1, k2, k3, k4 = jax.random.split(key, 4)
    s = 1.0 / math.sqrt(d_model)
    return {
        "w_in": jax.random.uniform(k1, (3 * d_model, d_model), jnp.float32, -s, s),
        "b_in": jax.random.uniform(k2, (3 * d_model,), jnp.float32, -s, s),
        "w_out": jax.random.uniform(k3, (out_dim, d_model), jnp.float32, -s, s),
        "b_out": jax.random.uniform(k4, (out_dim,), jnp.float32, -s, s),
    }


if __name__ == "__main__":
    B, S, d_model, out_dim, nhead = 2, 8, 32, 16, 4
    num_agents = 3

    key = jax.random.PRNGKey(0)
    kx, kt, kp = jax.random.split(key, 3)
    inputs = jax.random.normal(kx, (B, S, d_model), jnp.float32)
    type_embedding = jax.random.normal(kt, (B, S, d_model), jnp.float32)
    # key_padding_mask: True => masked. Keep at least a few keys unmasked per batch.
    mask = jnp.zeros((B, S), jnp.bool_).at[:, S - 2:].set(True)

    params = init_params(kp, d_model, out_dim)

    outputs, attns = multihead_attention_global_head(
        inputs, type_embedding, mask, num_agents=num_agents, params=params, nhead=nhead)
    jax.block_until_ready((outputs, attns))

    assert outputs.shape == (num_agents, B, out_dim)
    assert attns.shape == (B, num_agents, S)
    print("KERNEL_OK")
</pallas_src>

<mosaic_0001>
module attributes {stable_mosaic.version = 11 : i64} {
  func.func @_mha_kernel(%arg0: i32, %arg1: memref<1x3x32xbf16, #tpu.memory_space<vmem>>, %arg2: memref<1x128x32xbf16, #tpu.memory_space<vmem>>, %arg3: memref<1x128x32xbf16, #tpu.memory_space<vmem>>, %arg4: memref<1x1x128xf32, #tpu.memory_space<vmem>>, %arg5: memref<32x32xbf16, #tpu.memory_space<vmem>>, %arg6: memref<32x32xbf16, #tpu.memory_space<vmem>>, %arg7: memref<32x32xbf16, #tpu.memory_space<vmem>>, %arg8: memref<3x32xf32, #tpu.memory_space<vmem>>, %arg9: memref<32x128xbf16, #tpu.memory_space<vmem>>, %arg10: memref<1x128xf32, #tpu.memory_space<vmem>>, %arg11: memref<1x3x128xf32, #tpu.memory_space<vmem>>, %arg12: memref<1x3x128xf32, #tpu.memory_space<vmem>>) attributes {dimension_semantics = [#tpu.dimension_semantics<parallel>], iteration_bounds = array<i64: 2>, scalar_prefetch = 0 : i64, scratch_operands = 0 : i64, tpu.core_type = #tpu.core_type<tc>, window_params = [{transform_indices = @transform_0, window_bounds = array<i64: 1, 3, 32>}, {transform_indices = @transform_1, window_bounds = array<i64: 1, 128, 32>}, {transform_indices = @transform_2, window_bounds = array<i64: 1, 128, 32>}, {transform_indices = @transform_3, window_bounds = array<i64: 1, 1, 128>}, {pipeline_mode = #tpu.pipeline_mode<synchronous>, transform_indices = @transform_4, window_bounds = array<i64: 32, 32>}, {pipeline_mode = #tpu.pipeline_mode<synchronous>, transform_indices = @transform_5, window_bounds = array<i64: 32, 32>}, {pipeline_mode = #tpu.pipeline_mode<synchronous>, transform_indices = @transform_6, window_bounds = array<i64: 32, 32>}, {pipeline_mode = #tpu.pipeline_mode<synchronous>, transform_indices = @transform_7, window_bounds = array<i64: 3, 32>}, {pipeline_mode = #tpu.pipeline_mode<synchronous>, transform_indices = @transform_8, window_bounds = array<i64: 32, 128>}, {pipeline_mode = #tpu.pipeline_mode<synchronous>, transform_indices = @transform_9, window_bounds = array<i64: 1, 128>}, {transform_indices = @transform_10, window_bounds = array<i64: 1, 3, 128>}, {transform_indices = @transform_11, window_bounds = array<i64: 1, 3, 128>}]} {
    %c0 = arith.constant 0 : index
    %c0_0 = arith.constant 0 : index
    %0 = vector.load %arg5[%c0, %c0_0] : memref<32x32xbf16, #tpu.memory_space<vmem>>, vector<32x32xbf16>
    %c0_1 = arith.constant 0 : index
    %c0_2 = arith.constant 0 : index
    %1 = vector.load %arg6[%c0_1, %c0_2] : memref<32x32xbf16, #tpu.memory_space<vmem>>, vector<32x32xbf16>
    %c0_3 = arith.constant 0 : index
    %c0_4 = arith.constant 0 : index
    %2 = vector.load %arg7[%c0_3, %c0_4] : memref<32x32xbf16, #tpu.memory_space<vmem>>, vector<32x32xbf16>
    %c0_5 = arith.constant 0 : index
    %c0_6 = arith.constant 0 : index
    %3 = vector.load %arg9[%c0_5, %c0_6] : memref<32x128xbf16, #tpu.memory_space<vmem>>, vector<32x128xbf16>
    %c0_7 = arith.constant 0 : index
    %c0_8 = arith.constant 0 : index
    %4 = vector.load %arg8[%c0_7, %c0_8] : memref<3x32xf32, #tpu.memory_space<vmem>>, vector<1x32xf32>
    %c1 = arith.constant 1 : index
    %c0_9 = arith.constant 0 : index
    %5 = vector.load %arg8[%c1, %c0_9] : memref<3x32xf32, #tpu.memory_space<vmem>>, vector<1x32xf32>
    %c2 = arith.constant 2 : index
    %c0_10 = arith.constant 0 : index
    %6 = vector.load %arg8[%c2, %c0_10] : memref<3x32xf32, #tpu.memory_space<vmem>>, vector<1x32xf32>
    %c0_11 = arith.constant 0 : index
    %c0_12 = arith.constant 0 : index
    %7 = vector.load %arg10[%c0_11, %c0_12] : memref<1x128xf32, #tpu.memory_space<vmem>>, vector<1x128xf32>
    %c0_13 = arith.constant 0 : index
    %c0_14 = arith.constant 0 : index
    %c0_15 = arith.constant 0 : index
    %8 = vector.load %arg1[%c0_13, %c0_14, %c0_15] : memref<1x3x32xbf16, #tpu.memory_space<vmem>>, vector<1x3x32xbf16>
    %9 = vector.shape_cast %8 : vector<1x3x32xbf16> to vector<3x32xbf16>
    %cst = arith.constant dense<0.000000e+00> : vector<3x32xf32>
    %10 = tpu.matmul %9, %0, %cst {dimension_numbers = #tpu.dot_dimension_numbers<[1], [0], [0], [1], [0, 0, 1, 1], [], []>} : vector<3x32xbf16>, vector<32x32xbf16>, vector<3x32xf32> -> vector<3x32xf32>
    %11 = vector.broadcast %4 : vector<1x32xf32> to vector<3x32xf32>
    %12 = arith.addf %10, %11 : vector<3x32xf32>
    %c0_16 = arith.constant 0 : index
    %c0_17 = arith.constant 0 : index
    %c0_18 = arith.constant 0 : index
    %13 = vector.load %arg2[%c0_16, %c0_17, %c0_18] : memref<1x128x32xbf16, #tpu.memory_space<vmem>>, vector<1x128x32xbf16>
    %14 = vector.shape_cast %13 : vector<1x128x32xbf16> to vector<128x32xbf16>
    %cst_19 = arith.constant dense<0.000000e+00> : vector<128x32xf32>
    %15 = tpu.matmul %14, %1, %cst_19 {dimension_numbers = #tpu.dot_dimension_numbers<[1], [0], [0], [1], [0, 0, 1, 1], [], []>} : vector<128x32xbf16>, vector<32x32xbf16>, vector<128x32xf32> -> vector<128x32xf32>
    %16 = vector.broadcast %5 : vector<1x32xf32> to vector<128x32xf32>
    %17 = arith.addf %15, %16 : vector<128x32xf32>
    %c0_20 = arith.constant 0 : index
    %c0_21 = arith.constant 0 : index
    %c0_22 = arith.constant 0 : index
    %18 = vector.load %arg3[%c0_20, %c0_21, %c0_22] : memref<1x128x32xbf16, #tpu.memory_space<vmem>>, vector<1x128x32xbf16>
    %19 = vector.shape_cast %18 : vector<1x128x32xbf16> to vector<128x32xbf16>
    %cst_23 = arith.constant dense<0.000000e+00> : vector<128x32xf32>
    %20 = tpu.matmul %19, %2, %cst_23 {dimension_numbers = #tpu.dot_dimension_numbers<[1], [0], [0], [1], [0, 0, 1, 1], [], []>} : vector<128x32xbf16>, vector<32x32xbf16>, vector<128x32xf32> -> vector<128x32xf32>
    %21 = vector.broadcast %6 : vector<1x32xf32> to vector<128x32xf32>
    %22 = arith.addf %20, %21 : vector<128x32xf32>
    %23 = arith.truncf %12 : vector<3x32xf32> to vector<3x32xbf16>
    %24 = arith.truncf %17 : vector<128x32xf32> to vector<128x32xbf16>
    %25 = arith.truncf %22 : vector<128x32xf32> to vector<128x32xbf16>
    %c0_24 = arith.constant 0 : index
    %c0_25 = arith.constant 0 : index
    %c0_26 = arith.constant 0 : index
    %26 = vector.load %arg4[%c0_24, %c0_25, %c0_26] : memref<1x1x128xf32, #tpu.memory_space<vmem>>, vector<1x1x128xf32>
    %27 = vector.shape_cast %26 : vector<1x1x128xf32> to vector<1x128xf32>
    %cst_27 = arith.constant -1.000000e+09 : f32
    %28 = vector.broadcast %cst_27 : f32 to vector<1x128xf32>
    %29 = arith.mulf %27, %28 : vector<1x128xf32>
    %30 = vector.extract_strided_slice %23 {offsets = [0, 0], sizes = [3, 8], strides = [1, 1]} : vector<3x32xbf16> to vector<3x8xbf16>
    %31 = vector.shape_cast %30 : vector<3x8xbf16> to vector<1x3x8xbf16>
    %32 = vector.extract_strided_slice %24 {offsets = [0, 0], sizes = [128, 8], strides = [1, 1]} : vector<128x32xbf16> to vector<128x8xbf16>
    %33 = vector.shape_cast %32 : vector<128x8xbf16> to vector<1x128x8xbf16>
    %34 = vector.extract_strided_slice %25 {offsets = [0, 0], sizes = [128, 8], strides = [1, 1]} : vector<128x32xbf16> to vector<128x8xbf16>
    %35 = vector.shape_cast %34 : vector<128x8xbf16> to vector<1x128x8xbf16>
    %36 = vector.shape_cast %29 : vector<1x128xf32> to vector<1x1x128xf32>
    %37 = vector.extract_strided_slice %23 {offsets = [0, 8], sizes = [3, 8], strides = [1, 1]} : vector<3x32xbf16> to vector<3x8xbf16>
    %38 = vector.shape_cast %37 : vector<3x8xbf16> to vector<1x3x8xbf16>
    %39 = vector.extract_strided_slice %24 {offsets = [0, 8], sizes = [128, 8], strides = [1, 1]} : vector<128x32xbf16> to vector<128x8xbf16>
    %40 = vector.shape_cast %39 : vector<128x8xbf16> to vector<1x128x8xbf16>
    %41 = vector.extract_strided_slice %25 {offsets = [0, 8], sizes = [128, 8], strides = [1, 1]} : vector<128x32xbf16> to vector<128x8xbf16>
    %42 = vector.shape_cast %41 : vector<128x8xbf16> to vector<1x128x8xbf16>
    %43 = vector.shape_cast %29 : vector<1x128xf32> to vector<1x1x128xf32>
    %44 = vector.extract_strided_slice %23 {offsets = [0, 16], sizes = [3, 8], strides = [1, 1]} : vector<3x32xbf16> to vector<3x8xbf16>
    %45 = vector.shape_cast %44 : vector<3x8xbf16> to vector<1x3x8xbf16>
    %46 = vector.extract_strided_slice %24 {offsets = [0, 16], sizes = [128, 8], strides = [1, 1]} : vector<128x32xbf16> to vector<128x8xbf16>
    %47 = vector.shape_cast %46 : vector<128x8xbf16> to vector<1x128x8xbf16>
    %48 = vector.extract_strided_slice %25 {offsets = [0, 16], sizes = [128, 8], strides = [1, 1]} : vector<128x32xbf16> to vector<128x8xbf16>
    %49 = vector.shape_cast %48 : vector<128x8xbf16> to vector<1x128x8xbf16>
    %50 = vector.shape_cast %29 : vector<1x128xf32> to vector<1x1x128xf32>
    %51 = vector.extract_strided_slice %23 {offsets = [0, 24], sizes = [3, 8], strides = [1, 1]} : vector<3x32xbf16> to vector<3x8xbf16>
    %52 = vector.shape_cast %51 : vector<3x8xbf16> to vector<1x3x8xbf16>
    %53 = vector.extract_strided_slice %24 {offsets = [0, 24], sizes = [128, 8], strides = [1, 1]} : vector<128x32xbf16> to vector<128x8xbf16>
    %54 = vector.shape_cast %53 : vector<128x8xbf16> to vector<1x128x8xbf16>
    %55 = vector.extract_strided_slice %25 {offsets = [0, 24], sizes = [128, 8], strides = [1, 1]} : vector<128x32xbf16> to vector<128x8xbf16>
    %56 = vector.shape_cast %55 : vector<128x8xbf16> to vector<1x128x8xbf16>
    %57 = vector.shape_cast %29 : vector<1x128xf32> to vector<1x1x128xf32>
    %58 = tpu.concatenate %31, %38, %45, %52 in 0 : vector<1x3x8xbf16>, vector<1x3x8xbf16>, vector<1x3x8xbf16>, vector<1x3x8xbf16> -> vector<4x3x8xbf16>
    %59 = tpu.concatenate %33, %40, %47, %54 in 0 : vector<1x128x8xbf16>, vector<1x128x8xbf16>, vector<1x128x8xbf16>, vector<1x128x8xbf16> -> vector<4x128x8xbf16>
    %60 = tpu.concatenate %35, %42, %49, %56 in 0 : vector<1x128x8xbf16>, vector<1x128x8xbf16>, vector<1x128x8xbf16>, vector<1x128x8xbf16> -> vector<4x128x8xbf16>
    %61 = tpu.concatenate %36, %43, %50, %57 in 0 : vector<1x1x128xf32>, vector<1x1x128xf32>, vector<1x1x128xf32>, vector<1x1x128xf32> -> vector<4x1x128xf32>
    "tpu.trace_start"() <{level = 10 : i32, message = "zqd,zkd->zqk"}> : () -> ()
    %cst_28 = arith.constant dense<0.000000e+00> : vector<4x3x128xf32>
    %62 = tpu.matmul %58, %59, %cst_28 {dimension_numbers = #tpu.dot_dimension_numbers<[2], [2], [1], [1], [0, 0, 0, 1, 1, 1], [0], [0]>} : vector<4x3x8xbf16>, vector<4x128x8xbf16>, vector<4x3x128xf32> -> vector<4x3x128xf32>
    "tpu.trace_stop"() : () -> ()
    %63 = vector.broadcast %61 : vector<4x1x128xf32> to vector<4x3x128xf32>
    %64 = arith.addf %62, %63 : vector<4x3x128xf32>
    %cst_29 = arith.constant dense<0xFF800000> : vector<4x3xf32>
    %65 = vector.multi_reduction <maximumf>, %64, %cst_29 [2] : vector<4x3x128xf32> to vector<4x3xf32>
    %66 = vector.shape_cast %65 : vector<4x3xf32> to vector<4x3x1xf32>
    %67 = vector.broadcast %66 : vector<4x3x1xf32> to vector<4x3x128xf32>
    %68 = arith.subf %64, %67 : vector<4x3x128xf32>
    %69 = math.exp %68 : vector<4x3x128xf32>
    %cst_30 = arith.constant dense<0.000000e+00> : vector<4x3xf32>
    %70 = vector.multi_reduction <add>, %69, %cst_30 [2] : vector<4x3x128xf32> to vector<4x3xf32>
    %71 = vector.shape_cast %70 : vector<4x3xf32> to vector<4x3x1xf32>
    %72 = tpu.reciprocal %71 {approx = true} : vector<4x3x1xf32> -> vector<4x3x1xf32>
    %73 = vector.broadcast %72 : vector<4x3x1xf32> to vector<4x3x128xf32>
    %74 = arith.mulf %69, %73 : vector<4x3x128xf32>
    %75 = arith.truncf %74 : vector<4x3x128xf32> to vector<4x3x128xbf16>
    "tpu.trace_start"() <{level = 10 : i32, message = "zqk,zkd->zqd"}> : () -> ()
    %cst_31 = arith.constant dense<0.000000e+00> : vector<4x3x8xf32>
    %76 = tpu.matmul %75, %60, %cst_31 {dimension_numbers = #tpu.dot_dimension_numbers<[2], [1], [1], [2], [0, 0, 0, 1, 1, 2], [0], [0]>} : vector<4x3x128xbf16>, vector<4x128x8xbf16>, vector<4x3x8xf32> -> vector<4x3x8xf32>
    "tpu.trace_stop"() : () -> ()
    %77 = vector.extract_strided_slice %76 {offsets = [0, 0, 0], sizes = [1, 3, 8], strides = [1, 1, 1]} : vector<4x3x8xf32> to vector<1x3x8xf32>
    %78 = vector.shape_cast %77 : vector<1x3x8xf32> to vector<3x8xf32>
    %79 = vector.extract_strided_slice %76 {offsets = [1, 0, 0], sizes = [1, 3, 8], strides = [1, 1, 1]} : vector<4x3x8xf32> to vector<1x3x8xf32>
    %80 = vector.shape_cast %79 : vector<1x3x8xf32> to vector<3x8xf32>
    %81 = vector.extract_strided_slice %76 {offsets = [2, 0, 0], sizes = [1, 3, 8], strides = [1, 1, 1]} : vector<4x3x8xf32> to vector<1x3x8xf32>
    %82 = vector.shape_cast %81 : vector<1x3x8xf32> to vector<3x8xf32>
    %83 = vector.extract_strided_slice %76 {offsets = [3, 0, 0], sizes = [1, 3, 8], strides = [1, 1, 1]} : vector<4x3x8xf32> to vector<1x3x8xf32>
    %84 = vector.shape_cast %83 : vector<1x3x8xf32> to vector<3x8xf32>
    %85 = tpu.concatenate %78, %80, %82, %84 in 1 : vector<3x8xf32>, vector<3x8xf32>, vector<3x8xf32>, vector<3x8xf32> -> vector<3x32xf32>
    %86 = arith.truncf %85 : vector<3x32xf32> to vector<3x32xbf16>
    %cst_32 = arith.constant dense<0.000000e+00> : vector<3x128xf32>
    %87 = tpu.matmul %86, %3, %cst_32 {dimension_numbers = #tpu.dot_dimension_numbers<[1], [0], [0], [1], [0, 0, 1, 1], [], []>} : vector<3x32xbf16>, vector<32x128xbf16>, vector<3x128xf32> -> vector<3x128xf32>
    %88 = vector.broadcast %7 : vector<1x128xf32> to vector<3x128xf32>
    %89 = arith.addf %87, %88 : vector<3x128xf32>
    %c0_33 = arith.constant 0 : index
    %c0_34 = arith.constant 0 : index
    %c0_35 = arith.constant 0 : index
    %90 = vector.load %arg11[%c0_33, %c0_34, %c0_35] : memref<1x3x128xf32, #tpu.memory_space<vmem>>, vector<1x3x128xf32>
    %91 = vector.shape_cast %90 : vector<1x3x128xf32> to vector<3x128xf32>
    %92 = vector.shape_cast %89 : vector<3x128xf32> to vector<1x3x128xf32>
    tpu.vector_store %arg11[%c0_33, %c0_34, %c0_35], %92 {strides = array<i32>} : memref<1x3x128xf32, #tpu.memory_space<vmem>>, vector<1x3x128xf32>,
    %93 = vector.extract_strided_slice %74 {offsets = [0, 0, 0], sizes = [1, 3, 128], strides = [1, 1, 1]} : vector<4x3x128xf32> to vector<1x3x128xf32>
    %94 = vector.shape_cast %93 : vector<1x3x128xf32> to vector<3x128xf32>
    %95 = vector.extract_strided_slice %74 {offsets = [1, 0, 0], sizes = [1, 3, 128], strides = [1, 1, 1]} : vector<4x3x128xf32> to vector<1x3x128xf32>
    %96 = vector.shape_cast %95 : vector<1x3x128xf32> to vector<3x128xf32>
    %97 = arith.addf %94, %96 : vector<3x128xf32>
    %98 = vector.extract_strided_slice %74 {offsets = [2, 0, 0], sizes = [1, 3, 128], strides = [1, 1, 1]} : vector<4x3x128xf32> to vector<1x3x128xf32>
    %99 = vector.shape_cast %98 : vector<1x3x128xf32> to vector<3x128xf32>
    %100 = arith.addf %97, %99 : vector<3x128xf32>
    %101 = vector.extract_strided_slice %74 {offsets = [3, 0, 0], sizes = [1, 3, 128], strides = [1, 1, 1]} : vector<4x3x128xf32> to vector<1x3x128xf32>
    %102 = vector.shape_cast %101 : vector<1x3x128xf32> to vector<3x128xf32>
    %103 = arith.addf %100, %102 : vector<3x128xf32>
    %cst_36 = arith.constant 2.500000e-01 : f32
    %104 = vector.broadcast %cst_36 : f32 to vector<3x128xf32>
    %105 = arith.mulf %103, %104 : vector<3x128xf32>
    %c0_37 = arith.constant 0 : index
    %c0_38 = arith.constant 0 : index
    %c0_39 = arith.constant 0 : index
    %106 = vector.load %arg12[%c0_37, %c0_38, %c0_39] : memref<1x3x128xf32, #tpu.memory_space<vmem>>, vector<1x3x128xf32>
    %107 = vector.shape_cast %106 : vector<1x3x128xf32> to vector<3x128xf32>
    %108 = vector.shape_cast %105 : vector<3x128xf32> to vector<1x3x128xf32>
    tpu.vector_store %arg12[%c0_37, %c0_38, %c0_39], %108 {strides = array<i32>} : memref<1x3x128xf32, #tpu.memory_space<vmem>>, vector<1x3x128xf32>,
    return
  }
  func.func @transform_0(%arg0: i32) -> (i32, i32, i32) {
    %c0_i32 = arith.constant 0 : i32
    %c0_i32_0 = arith.constant 0 : i32
    %c0_i32_1 = arith.constant 0 : i32
    return %arg0, %c0_i32, %c0_i32_0 : i32, i32, i32
  }
  func.func @transform_1(%arg0: i32) -> (i32, i32, i32) {
    %c0_i32 = arith.constant 0 : i32
    %c0_i32_0 = arith.constant 0 : i32
    %c0_i32_1 = arith.constant 0 : i32
    return %arg0, %c0_i32, %c0_i32_0 : i32, i32, i32
  }
  func.func @transform_2(%arg0: i32) -> (i32, i32, i32) {
    %c0_i32 = arith.constant 0 : i32
    %c0_i32_0 = arith.constant 0 : i32
    %c0_i32_1 = arith.constant 0 : i32
    return %arg0, %c0_i32, %c0_i32_0 : i32, i32, i32
  }
  func.func @transform_3(%arg0: i32) -> (i32, i32, i32) {
    %c0_i32 = arith.constant 0 : i32
    %c0_i32_0 = arith.constant 0 : i32
    %c0_i32_1 = arith.constant 0 : i32
    return %arg0, %c0_i32, %c0_i32_0 : i32, i32, i32
  }
  func.func @transform_4(%arg0: i32) -> (i32, i32) {
    %c0_i32 = arith.constant 0 : i32
    %c0_i32_0 = arith.constant 0 : i32
    %c0_i32_1 = arith.constant 0 : i32
    return %c0_i32, %c0_i32_0 : i32, i32
  }
  func.func @transform_5(%arg0: i32) -> (i32, i32) {
    %c0_i32 = arith.constant 0 : i32
    %c0_i32_0 = arith.constant 0 : i32
    %c0_i32_1 = arith.constant 0 : i32
    return %c0_i32, %c0_i32_0 : i32, i32
  }
  func.func @transform_6(%arg0: i32) -> (i32, i32) {
    %c0_i32 = arith.constant 0 : i32
    %c0_i32_0 = arith.constant 0 : i32
    %c0_i32_1 = arith.constant 0 : i32
    return %c0_i32, %c0_i32_0 : i32, i32
  }
  func.func @transform_7(%arg0: i32) -> (i32, i32) {
    %c0_i32 = arith.constant 0 : i32
    %c0_i32_0 = arith.constant 0 : i32
    %c0_i32_1 = arith.constant 0 : i32
    return %c0_i32, %c0_i32_0 : i32, i32
  }
  func.func @transform_8(%arg0: i32) -> (i32, i32) {
    %c0_i32 = arith.constant 0 : i32
    %c0_i32_0 = arith.constant 0 : i32
    %c0_i32_1 = arith.constant 0 : i32
    return %c0_i32, %c0_i32_0 : i32, i32
  }
  func.func @transform_9(%arg0: i32) -> (i32, i32) {
    %c0_i32 = arith.constant 0 : i32
    %c0_i32_0 = arith.constant 0 : i32
    %c0_i32_1 = arith.constant 0 : i32
    return %c0_i32, %c0_i32_0 : i32, i32
  }
  func.func @transform_10(%arg0: i32) -> (i32, i32, i32) {
    %c0_i32 = arith.constant 0 : i32
    %c0_i32_0 = arith.constant 0 : i32
    %c0_i32_1 = arith.constant 0 : i32
    return %arg0, %c0_i32, %c0_i32_0 : i32, i32, i32
  }
  func.func @transform_11(%arg0: i32) -> (i32, i32, i32) {
    %c0_i32 = arith.constant 0 : i32
    %c0_i32_0 = arith.constant 0 : i32
    %c0_i32_1 = arith.constant 0 : i32
    return %arg0, %c0_i32, %c0_i32_0 : i32, i32, i32
  }
}

</mosaic_0001>

<llo_original>
// kernel: multihead_attention_global_head.1
$region0: #{multihead_attention_global_head.1}
  #allocation0 [shape = 'u32[]', space=smem, size = 0x4, offset = 0x4, fixed_abs, tag = 'smem constant byte address 0x4 - core index']
  #allocation1 [shape = 'u32[144,128]{1,0:T(1,128)}', space=vmem, size = 0x12000, scoped, tag = 'internal scratch']
  %s0 = inlined_call_operand.vmem [shape: bf16[2,3,32], index: 0, kind: input, shape index: {}]
  %s1 = inlined_call_operand.vmem [shape: bf16[2,128,32], index: 1, kind: input, shape index: {}]
  %s2 = inlined_call_operand.vmem [shape: bf16[2,128,32], index: 2, kind: input, shape index: {}]
  %s3 = inlined_call_operand.vmem [shape: f32[2,1,128], index: 3, kind: input, shape index: {}]
  %s4 = inlined_call_operand.vmem [shape: bf16[32,32], index: 4, kind: input, shape index: {}]
  %s5 = inlined_call_operand.vmem [shape: bf16[32,32], index: 5, kind: input, shape index: {}]
  %s6 = inlined_call_operand.vmem [shape: bf16[32,32], index: 6, kind: input, shape index: {}]
  %s7 = inlined_call_operand.vmem [shape: f32[3,32], index: 7, kind: input, shape index: {}]
  %s8 = inlined_call_operand.vmem [shape: bf16[32,128], index: 8, kind: input, shape index: {}]
  %s9 = inlined_call_operand.vmem [shape: f32[1,128], index: 9, kind: input, shape index: {}]
  %s10 = inlined_call_operand.vmem [shape: f32[2,3,128], index: 10, kind: output, shape index: {0}]
  %s11 = inlined_call_operand.vmem [shape: f32[2,3,128], index: 11, kind: output, shape index: {1}]
  %12 = xla_tuple %s10, %s11
  %s13 = sld [smem:[#allocation0]]
  $region81: #{multihead_attention_global_head.1} parent=0
    _
  %s15 = ssub.s32 1, %s13
  %s16 = scalar_select 0, %s15, %s13
  loop: start=0, step=1, limit=4
  $region2: #{multihead_attention_global_head.1} parent=0 // loop_pre_header
    _
  $region3: #{multihead_attention_global_head.1} parent=0 // loop_header
    %s18 = sphi 0, %s22
    %p19 = scmp.ge.s32.totalorder %s18, 4
    %s28 = sphi 0, %s30
    %s31 = sphi 0, %s28
    %s32 = sphi 0, %s31
    %s48 = sphi 0, %s32
    %s54 = sphi 0, %s56
    %s57 = sphi 0, %s54
    %s58 = sphi 0, %s57
    %s74 = sphi 0, %s58
    %s80 = sphi 0, %s82
    %s83 = sphi 0, %s80
    %s84 = sphi 0, %s83
    %s100 = sphi 0, %s84
    %s106 = sphi 0, %s108
    %s109 = sphi 0, %s106
    %s110 = sphi 0, %s109
    %s126 = sphi 0, %s110
    %s130 = sphi 0, %s130
    %s132 = sphi 0, %s130
    %s133 = sphi 0, %s132
    %s147 = sphi 0, %s133
    %s151 = sphi 0, %s151
    %s153 = sphi 0, %s151
    %s154 = sphi 0, %s153
    %s168 = sphi 0, %s154
    %s172 = sphi 0, %s172
    %s174 = sphi 0, %s172
    %s175 = sphi 0, %s174
    %s189 = sphi 0, %s175
    %s193 = sphi 0, %s193
    %s195 = sphi 0, %s193
    %s196 = sphi 0, %s195
    %s210 = sphi 0, %s196
    %s214 = sphi 0, %s214
    %s216 = sphi 0, %s214
    %s217 = sphi 0, %s216
    %s231 = sphi 0, %s217
    %s235 = sphi 0, %s235
    %s237 = sphi 0, %s235
    %s238 = sphi 0, %s237
    %s252 = sphi 0, %s238
    %s258 = sphi 0, %s260
    %s261 = sphi 0, %s258
    %s262 = sphi 0, %s261
    %s278 = sphi 0, %s262
    %s284 = sphi 0, %s286
    %s287 = sphi 0, %s284
    %s288 = sphi 0, %s287
    %s304 = sphi 0, %s288
  $region4: #{multihead_attention_global_head.1} parent=0 // loop_header_branch
    %21 = sbr.rel (%p19) target = $region8
  $region5: #{multihead_attention_global_head.1} parent=0 // loop_body
    %s23 = ssub.s32 %s18, 1
    %s24 = ssub.s32 %s18, 2
    %s25 = sadd.s32 %s18, 1
    %s26 = ssub.s32 %s18, %s25
    %p27 = scmp.eq.s32.totalorder %s26, 0
    %s29 = sadd.s32 %s28, 1
    %s30 = scalar_select %p27, %s28, %s29
    %p33 = pneg %p27
    %p34 = scmp.eq.s32.totalorder %s18, 1
    %p35 = por %p33, %p34
    %p36 = scmp.ne.s32.totalorder %s28, %s31
    %p37 = scmp.eq.s32.totalorder %s18, 0
    %p38 = por %p36, %p37
    %p39 = scmp.ne.s32.totalorder %s28, %s31
    %p40 = scmp.eq.s32.totalorder %s23, 1
    %p41 = por %p39, %p40
    %p42 = scmp.ne.s32.totalorder %s31, %s32
    %p43 = scmp.eq.s32.totalorder %s23, 0
    %p44 = por %p42, %p43
    %p45 = scmp.ne.s32.totalorder %s31, %s32
    %p46 = scmp.eq.s32.totalorder %s24, 1
    %p47 = por %p45, %p46
    %p49 = scmp.ne.s32.totalorder %s32, %s48
    %p50 = scmp.eq.s32.totalorder %s24, 0
    %p51 = por %p49, %p50
    %s52 = ssub.s32 %s18, %s25
    %p53 = scmp.eq.s32.totalorder %s52, 0
    %s55 = sadd.s32 %s54, 1
    %s56 = scalar_select %p53, %s54, %s55
    %p59 = pneg %p53
    %p60 = scmp.eq.s32.totalorder %s18, 1
    %p61 = por %p59, %p60
    %p62 = scmp.ne.s32.totalorder %s54, %s57
    %p63 = scmp.eq.s32.totalorder %s18, 0
    %p64 = por %p62, %p63
    %p65 = scmp.ne.s32.totalorder %s54, %s57
    %p66 = scmp.eq.s32.totalorder %s23, 1
    %p67 = por %p65, %p66
    %p68 = scmp.ne.s32.totalorder %s57, %s58
    %p69 = scmp.eq.s32.totalorder %s23, 0
    %p70 = por %p68, %p69
    %p71 = scmp.ne.s32.totalorder %s57, %s58
    %p72 = scmp.eq.s32.totalorder %s24, 1
    %p73 = por %p71, %p72
    %p75 = scmp.ne.s32.totalorder %s58, %s74
    %p76 = scmp.eq.s32.totalorder %s24, 0
    %p77 = por %p75, %p76
    %s78 = ssub.s32 %s18, %s25
    %p79 = scmp.eq.s32.totalorder %s78, 0
    %s81 = sadd.s32 %s80, 1
    %s82 = scalar_select %p79, %s80, %s81
    %p85 = pneg %p79
    %p86 = scmp.eq.s32.totalorder %s18, 1
    %p87 = por %p85, %p86
    %p88 = scmp.ne.s32.totalorder %s80, %s83
    %p89 = scmp.eq.s32.totalorder %s18, 0
    %p90 = por %p88, %p89
    %p91 = scmp.ne.s32.totalorder %s80, %s83
    %p92 = scmp.eq.s32.totalorder %s23, 1
    %p93 = por %p91, %p92
    %p94 = scmp.ne.s32.totalorder %s83, %s84
    %p95 = scmp.eq.s32.totalorder %s23, 0
    %p96 = por %p94, %p95
    %p97 = scmp.ne.s32.totalorder %s83, %s84
    %p98 = scmp.eq.s32.totalorder %s24, 1
    %p99 = por %p97, %p98
    %p101 = scmp.ne.s32.totalorder %s84, %s100
    %p102 = scmp.eq.s32.totalorder %s24, 0
    %p103 = por %p101, %p102
    %s104 = ssub.s32 %s18, %s25
    %p105 = scmp.eq.s32.totalorder %s104, 0
    %s107 = sadd.s32 %s106, 1
    %s108 = scalar_select %p105, %s106, %s107
    %p111 = pneg %p105
    %p112 = scmp.eq.s32.totalorder %s18, 1
    %p113 = por %p111, %p112
    %p114 = scmp.ne.s32.totalorder %s106, %s109
    %p115 = scmp.eq.s32.totalorder %s18, 0
    %p116 = por %p114, %p115
    %p117 = scmp.ne.s32.totalorder %s106, %s109
    %p118 = scmp.eq.s32.totalorder %s23, 1
    %p119 = por %p117, %p118
    %p120 = scmp.ne.s32.totalorder %s109, %s110
    %p121 = scmp.eq.s32.totalorder %s23, 0
    %p122 = por %p120, %p121
    %p123 = scmp.ne.s32.totalorder %s109, %s110
    %p124 = scmp.eq.s32.totalorder %s24, 1
    %p125 = por %p123, %p124
    %p127 = scmp.ne.s32.totalorder %s110, %s126
    %p128 = scmp.eq.s32.totalorder %s24, 0
    %p129 = por %p127, %p128
    %s131 = sadd.s32 %s130, 1
    %p134 = scmp.eq.s32.totalorder %s18, 1
    %p135 = scmp.ne.s32.totalorder %s130, %s132
    %p136 = scmp.eq.s32.totalorder %s18, 0
    %p137 = por %p135, %p136
    %p138 = scmp.ne.s32.totalorder %s130, %s132
    %p139 = scmp.eq.s32.totalorder %s23, 1
    %p140 = por %p138, %p139
    %p141 = scmp.ne.s32.totalorder %s132, %s133
    %p142 = scmp.eq.s32.totalorder %s23, 0
    %p143 = por %p141, %p142
    %p144 = scmp.ne.s32.totalorder %s132, %s133
    %p145 = scmp.eq.s32.totalorder %s24, 1
    %p146 = por %p144, %p145
    %p148 = scmp.ne.s32.totalorder %s133, %s147
    %p149 = scmp.eq.s32.totalorder %s24, 0
    %p150 = por %p148, %p149
    %s152 = sadd.s32 %s151, 1
    %p155 = scmp.eq.s32.totalorder %s18, 1
    %p156 = scmp.ne.s32.totalorder %s151, %s153
    %p157 = scmp.eq.s32.totalorder %s18, 0
    %p158 = por %p156, %p157
    %p159 = scmp.ne.s32.totalorder %s151, %s153
    %p160 = scmp.eq.s32.totalorder %s23, 1
    %p161 = por %p159, %p160
    %p162 = scmp.ne.s32.totalorder %s153, %s154
    %p163 = scmp.eq.s32.totalorder %s23, 0
    %p164 = por %p162, %p163
    %p165 = scmp.ne.s32.totalorder %s153, %s154
    %p166 = scmp.eq.s32.totalorder %s24, 1
    %p167 = por %p165, %p166
    %p169 = scmp.ne.s32.totalorder %s154, %s168
    %p170 = scmp.eq.s32.totalorder %s24, 0
    %p171 = por %p169, %p170
    %s173 = sadd.s32 %s172, 1
    %p176 = scmp.eq.s32.totalorder %s18, 1
    %p177 = scmp.ne.s32.totalorder %s172, %s174
    %p178 = scmp.eq.s32.totalorder %s18, 0
    %p179 = por %p177, %p178
    %p180 = scmp.ne.s32.totalorder %s172, %s174
    %p181 = scmp.eq.s32.totalorder %s23, 1
    %p182 = por %p180, %p181
    %p183 = scmp.ne.s32.totalorder %s174, %s175
    %p184 = scmp.eq.s32.totalorder %s23, 0
    %p185 = por %p183, %p184
    %p186 = scmp.ne.s32.totalorder %s174, %s175
    %p187 = scmp.eq.s32.totalorder %s24, 1
    %p188 = por %p186, %p187
    %p190 = scmp.ne.s32.totalorder %s175, %s189
    %p191 = scmp.eq.s32.totalorder %s24, 0
    %p192 = por %p190, %p191
    %s194 = sadd.s32 %s193, 1
    %p197 = scmp.eq.s32.totalorder %s18, 1
    %p198 = scmp.ne.s32.totalorder %s193, %s195
    %p199 = scmp.eq.s32.totalorder %s18, 0
    %p200 = por %p198, %p199
    %p201 = scmp.ne.s32.totalorder %s193, %s195
    %p202 = scmp.eq.s32.totalorder %s23, 1
    %p203 = por %p201, %p202
    %p204 = scmp.ne.s32.totalorder %s195, %s196
    %p205 = scmp.eq.s32.totalorder %s23, 0
    %p206 = por %p204, %p205
    %p207 = scmp.ne.s32.totalorder %s195, %s196
    %p208 = scmp.eq.s32.totalorder %s24, 1
    %p209 = por %p207, %p208
    %p211 = scmp.ne.s32.totalorder %s196, %s210
    %p212 = scmp.eq.s32.totalorder %s24, 0
    %p213 = por %p211, %p212
    %s215 = sadd.s32 %s214, 1
    %p218 = scmp.eq.s32.totalorder %s18, 1
    %p219 = scmp.ne.s32.totalorder %s214, %s216
    %p220 = scmp.eq.s32.totalorder %s18, 0
    %p221 = por %p219, %p220
    %p222 = scmp.ne.s32.totalorder %s214, %s216
    %p223 = scmp.eq.s32.totalorder %s23, 1
    %p224 = por %p222, %p223
    %p225 = scmp.ne.s32.totalorder %s216, %s217
    %p226 = scmp.eq.s32.totalorder %s23, 0
    %p227 = por %p225, %p226
    %p228 = scmp.ne.s32.totalorder %s216, %s217
    %p229 = scmp.eq.s32.totalorder %s24, 1
    %p230 = por %p228, %p229
    %p232 = scmp.ne.s32.totalorder %s217, %s231
    %p233 = scmp.eq.s32.totalorder %s24, 0
    %p234 = por %p232, %p233
    %s236 = sadd.s32 %s235, 1
    %p239 = scmp.eq.s32.totalorder %s18, 1
    %p240 = scmp.ne.s32.totalorder %s235, %s237
    %p241 = scmp.eq.s32.totalorder %s18, 0
    %p242 = por %p240, %p241
    %p243 = scmp.ne.s32.totalorder %s235, %s237
    %p244 = scmp.eq.s32.totalorder %s23, 1
    %p245 = por %p243, %p244
    %p246 = scmp.ne.s32.totalorder %s237, %s238
    %p247 = scmp.eq.s32.totalorder %s23, 0
    %p248 = por %p246, %p247
    %p249 = scmp.ne.s32.totalorder %s237, %s238
    %p250 = scmp.eq.s32.totalorder %s24, 1
    %p251 = por %p249, %p250
    %p253 = scmp.ne.s32.totalorder %s238, %s252
    %p254 = scmp.eq.s32.totalorder %s24, 0
    %p255 = por %p253, %p254
    %s256 = ssub.s32 %s18, %s25
    %p257 = scmp.eq.s32.totalorder %s256, 0
    %s259 = sadd.s32 %s258, 1
    %s260 = scalar_select %p257, %s258, %s259
    %p263 = pneg %p257
    %p264 = scmp.eq.s32.totalorder %s18, 1
    %p265 = por %p263, %p264
    %p266 = scmp.ne.s32.totalorder %s258, %s261
    %p267 = scmp.eq.s32.totalorder %s18, 0
    %p268 = por %p266, %p267
    %p269 = scmp.ne.s32.totalorder %s258, %s261
    %p270 = scmp.eq.s32.totalorder %s23, 1
    %p271 = por %p269, %p270
    %p272 = scmp.ne.s32.totalorder %s261, %s262
    %p273 = scmp.eq.s32.totalorder %s23, 0
    %p274 = por %p272, %p273
    %p275 = scmp.ne.s32.totalorder %s261, %s262
    %p276 = scmp.eq.s32.totalorder %s24, 1
    %p277 = por %p275, %p276
    %p279 = scmp.ne.s32.totalorder %s262, %s278
    %p280 = scmp.eq.s32.totalorder %s24, 0
    %p281 = por %p279, %p280
    %s282 = ssub.s32 %s18, %s25
    %p283 = scmp.eq.s32.totalorder %s282, 0
    %s285 = sadd.s32 %s284, 1
    %s286 = scalar_select %p283, %s284, %s285
    %p289 = pneg %p283
    %p290 = scmp.eq.s32.totalorder %s18, 1
    %p291 = por %p289, %p290
    %p292 = scmp.ne.s32.totalorder %s284, %s287
    %p293 = scmp.eq.s32.totalorder %s18, 0
    %p294 = por %p292, %p293
    %p295 = scmp.ne.s32.totalorder %s284, %s287
    %p296 = scmp.eq.s32.totalorder %s23, 1
    %p297 = por %p295, %p296
    %p298 = scmp.ne.s32.totalorder %s287, %s288
    %p299 = scmp.eq.s32.totalorder %s23, 0
    %p300 = por %p298, %p299
    %p301 = scmp.ne.s32.totalorder %s287, %s288
    %p302 = scmp.eq.s32.totalorder %s24, 1
    %p303 = por %p301, %p302
    %p305 = scmp.ne.s32.totalorder %s288, %s304
    %p306 = scmp.eq.s32.totalorder %s24, 0
    %p307 = por %p305, %p306
    %p308 = scmp.le.s32.totalorder 1, %s18
    %p309 = scmp.lt.s32.totalorder %s18, 3
    %p310 = pnand %p308, %p309
    %p311 = pneg %p310
    // Predicated region
    $region9: #{multihead_attention_global_head.1} parent=5 // pred_check
      _
    $region10: #{multihead_attention_global_head.1} parent=5 // pred_check_branch
      %313 = sbr.rel (%p310) target = $region12
    $region11: #{multihead_attention_global_head.1} parent=5 // pred_region
      %s314 = ssub.s32 %s18, 1
      // Predicated region
      $region13: #{multihead_attention_global_head.1} parent=11 // pred_check
        %p315 = pneg %p143
      $region14: #{multihead_attention_global_head.1} parent=11 // pred_check_branch
        %317 = sbr.rel (%p315) target = $region16
      $region15: #{multihead_attention_global_head.1} parent=11 // pred_region
        _
      $region16: #{multihead_attention_global_head.1} parent=11 // pred_fallthru
        _
      // Predicated region
      $region17: #{multihead_attention_global_head.1} parent=11 // pred_check
        %p318 = pneg %p164
      $region18: #{multihead_attention_global_head.1} parent=11 // pred_check_branch
        %320 = sbr.rel (%p318) target = $region20
      $region19: #{multihead_attention_global_head.1} parent=11 // pred_region
        _
      $region20: #{multihead_attention_global_head.1} parent=11 // pred_fallthru
        _
      // Predicated region
      $region21: #{multihead_attention_global_head.1} parent=11 // pred_check
        %p321 = pneg %p185
      $region22: #{multihead_attention_global_head.1} parent=11 // pred_check_branch
        %323 = sbr.rel (%p321) target = $region24
      $region23: #{multihead_attention_global_head.1} parent=11 // pred_region
        _
      $region24: #{multihead_attention_global_head.1} parent=11 // pred_fallthru
        _
      // Predicated region
      $region25: #{multihead_attention_global_head.1} parent=11 // pred_check
        %p324 = pneg %p206
      $region26: #{multihead_attention_global_head.1} parent=11 // pred_check_branch
        %326 = sbr.rel (%p324) target = $region28
      $region27: #{multihead_attention_global_head.1} parent=11 // pred_region
        _
      $region28: #{multihead_attention_global_head.1} parent=11 // pred_fallthru
        _
      // Predicated region
      $region29: #{multihead_attention_global_head.1} parent=11 // pred_check
        %p327 = pneg %p227
      $region30: #{multihead_attention_global_head.1} parent=11 // pred_check_branch
        %329 = sbr.rel (%p327) target = $region32
      $region31: #{multihead_attention_global_head.1} parent=11 // pred_region
        _
      $region32: #{multihead_attention_global_head.1} parent=11 // pred_fallthru
        _
      // Predicated region
      $region33: #{multihead_attention_global_head.1} parent=11 // pred_check
        %p330 = pneg %p248
      $region34: #{multihead_attention_global_head.1} parent=11 // pred_check_branch
        %332 = sbr.rel (%p330) target = $region36
      $region35: #{multihead_attention_global_head.1} parent=11 // pred_region
        _
      $region36: #{multihead_attention_global_head.1} parent=11 // pred_fallthru
        _
    $region12: #{multihead_attention_global_head.1} parent=5 // pred_fallthru
      _
    %p333 = scmp.lt.s32.totalorder %s18, 2
    // Predicated region
    $region37: #{multihead_attention_global_head.1} parent=5 // pred_check
      %p334 = pneg %p333
    $region38: #{multihead_attention_global_head.1} parent=5 // pred_check_branch
      %336 = sbr.rel (%p334) target = $region40
    $region39: #{multihead_attention_global_head.1} parent=5 // pred_region
      // Predicated region
      $region41: #{multihead_attention_global_head.1} parent=39 // pred_check
        %p337 = pneg %p38
      $region42: #{multihead_attention_global_head.1} parent=39 // pred_check_branch
        %339 = sbr.rel (%p337) target = $region44
      $region43: #{multihead_attention_global_head.1} parent=39 // pred_region
        %p340 = scmp.lt.s32.totalorder %s18, 1
        %s341 = scalar_select %p340, %s18, 1
        %s342 = smul.addr %s341, 2
        %s343 = scalar_lea.vmem %s0, %s342
      $region44: #{multihead_attention_global_head.1} parent=39 // pred_fallthru
        _
      // Predicated region
      $region45: #{multihead_attention_global_head.1} parent=39 // pred_check
        %p344 = pneg %p64
      $region46: #{multihead_attention_global_head.1} parent=39 // pred_check_branch
        %346 = sbr.rel (%p344) target = $region48
      $region47: #{multihead_attention_global_head.1} parent=39 // pred_region
        %p347 = scmp.lt.s32.totalorder %s18, 1
        %s348 = scalar_select %p347, %s18, 1
        %s349 = smul.addr %s348, 16
        %s350 = smul.addr %s349, 4
        %s351 = scalar_lea.vmem %s1, %s350
      $region48: #{multihead_attention_global_head.1} parent=39 // pred_fallthru
        _
      // Predicated region
      $region49: #{multihead_attention_global_head.1} parent=39 // pred_check
        %p352 = pneg %p90
      $region50: #{multihead_attention_global_head.1} parent=39 // pred_check_branch
        %354 = sbr.rel (%p352) target = $region52
      $region51: #{multihead_attention_global_head.1} parent=39 // pred_region
        %p355 = scmp.lt.s32.totalorder %s18, 1
        %s356 = scalar_select %p355, %s18, 1
        %s357 = smul.addr %s356, 16
        %s358 = smul.addr %s357, 4
        %s359 = scalar_lea.vmem %s2, %s358
      $region52: #{multihead_attention_global_head.1} parent=39 // pred_fallthru
        _
      // Predicated region
      $region53: #{multihead_attention_global_head.1} parent=39 // pred_check
        %p360 = pneg %p116
      $region54: #{multihead_attention_global_head.1} parent=39 // pred_check_branch
        %362 = sbr.rel (%p360) target = $region56
      $region55: #{multihead_attention_global_head.1} parent=39 // pred_region
        %p363 = scmp.lt.s32.totalorder %s18, 1
        %s364 = scalar_select %p363, %s18, 1
        %s365 = scalar_lea.vmem %s3, %s364
      $region56: #{multihead_attention_global_head.1} parent=39 // pred_fallthru
        _
    $region40: #{multihead_attention_global_head.1} parent=5 // pred_fallthru
      _
    %p366 = scmp.le.s32.totalorder 1, %s18
    %p367 = scmp.lt.s32.totalorder %s18, 3
    %p368 = pnand %p366, %p367
    %p369 = pneg %p368
    // Predicated region
    $region57: #{multihead_attention_global_head.1} parent=5 // pred_check
      _
    $region58: #{multihead_attention_global_head.1} parent=5 // pred_check_branch
      %371 = sbr.rel (%p368) target = $region60
    $region59: #{multihead_attention_global_head.1} parent=5 // pred_region
      %s372 = ssub.s32 %s18, 1
      %p373 = scmp.lt.s32.totalorder %s23, 1
      %s374 = scalar_select %p373, %s23, 1
      %s375 = smul.addr %s374, 2
      %s376 = scalar_lea.vmem %s0, %s375
      %p377 = pneg %p44
      %p378 = pneg %p41
      %p379 = scmp.lt.s32.totalorder %s23, 1
      %s380 = scalar_select %p379, %s23, 1
      %s381 = smul.addr %s380, 16
      %s382 = smul.addr %s381, 4
      %s383 = scalar_lea.vmem %s1, %s382
      %p384 = pneg %p70
      %p385 = pneg %p67
      %p386 = scmp.lt.s32.totalorder %s23, 1
      %s387 = scalar_select %p386, %s23, 1
      %s388 = smul.addr %s387, 16
      %s389 = smul.addr %s388, 4
      %s390 = scalar_lea.vmem %s2, %s389
      %p391 = pneg %p96
      %p392 = pneg %p93
      %p393 = scmp.lt.s32.totalorder %s23, 1
      %s394 = scalar_select %p393, %s23, 1
      %s395 = scalar_lea.vmem %s3, %s394
      %p396 = pneg %p122
      %p397 = pneg %p119
      %p398 = pneg %p143
      %p399 = pneg %p140
      %p400 = pneg %p164
      %p401 = pneg %p161
      %p402 = pneg %p185
      %p403 = pneg %p182
      %p404 = pneg %p206
      %p405 = pneg %p203
      %p406 = pneg %p227
      %p407 = pneg %p224
      %p408 = pneg %p248
      %p409 = pneg %p245
      %p410 = pneg %p274
      %p411 = pneg %p271
      %p412 = scmp.lt.s32.totalorder %s23, 1
      %s413 = scalar_select %p412, %s23, 1
      %s414 = smul.addr %s413, 4
      %s415 = scalar_lea.vmem %s10, %s414
      %p416 = pneg %p300
      %p417 = pneg %p297
      %p418 = scmp.lt.s32.totalorder %s23, 1
      %s419 = scalar_select %p418, %s23, 1
      %s420 = smul.addr %s419, 4
      %s421 = scalar_lea.vmem %s11, %s420
      %p422 = scmp.lt.s32.totalorder %s23, 1
      %s423 = scalar_select %p422, %s23, 1
      %s424 = smul.addr %s423, 2
      %s425 = scalar_lea.vmem %s0, %s424
      %p426 = scmp.lt.s32.totalorder %s23, 1
      %s427 = scalar_select %p426, %s23, 1
      %s428 = smul.addr %s427, 16
      %s429 = smul.addr %s428, 4
      %s430 = scalar_lea.vmem %s1, %s429
      %p431 = scmp.lt.s32.totalorder %s23, 1
      %s432 = scalar_select %p431, %s23, 1
      %s433 = smul.addr %s432, 16
      %s434 = smul.addr %s433, 4
      %s435 = scalar_lea.vmem %s2, %s434
      %p436 = scmp.lt.s32.totalorder %s23, 1
      %s437 = scalar_select %p436, %s23, 1
      %s438 = scalar_lea.vmem %s3, %s437
      %p439 = scmp.lt.s32.totalorder %s23, 1
      %s440 = scalar_select %p439, %s23, 1
      %s441 = smul.addr %s440, 4
      %s442 = scalar_lea.vmem %s10, %s441
      %p443 = scmp.lt.s32.totalorder %s23, 1
      %s444 = scalar_select %p443, %s23, 1
      %s445 = smul.addr %s444, 4
      %s446 = scalar_lea.vmem %s11, %s445
      %v448 = vld [vmem:[%s4] sm:$0xf]
      %v449 = vld [vmem:[%s4 + $0x4] sm:$0xf]
      %v450 = vld [vmem:[%s4 + $0x8] sm:$0xf]
      %v451 = vld [vmem:[%s4 + $0xc] sm:$0xf]
      %v452 = vld [vmem:[%s5] sm:$0xf]
      %v453 = vld [vmem:[%s5 + $0x4] sm:$0xf]
      %v454 = vld [vmem:[%s5 + $0x8] sm:$0xf]
      %v455 = vld [vmem:[%s5 + $0xc] sm:$0xf]
      %v456 = vld [vmem:[%s6] sm:$0xf]
      %v457 = vld [vmem:[%s6 + $0x4] sm:$0xf]
      %v458 = vld [vmem:[%s6 + $0x8] sm:$0xf]
      %v459 = vld [vmem:[%s6 + $0xc] sm:$0xf]
      %v460 = vld [vmem:[%s8] sm:$0xf]
      %v461 = vld [vmem:[%s8 + $0x4] sm:$0xf]
      %v462 = vld [vmem:[%s8 + $0x8] sm:$0xf]
      %v463 = vld [vmem:[%s8 + $0xc] sm:$0xf]
      %v464 = vld [vmem:[%s7] sm:$0x1]
      %v465 = vld [vmem:[%s7 + $0x1] sm:$0x1]
      %v466 = vld [vmem:[%s7 + $0x2] sm:$0x1]
      %v467 = vld [vmem:[%s9] sm:$0x1]
      %v468 = vld [vmem:[%s425] sm:$0x3]
      %v469 = vlaneseq
      %v470 = vshrl.u32 %v469, 7
      %v471 = vsub.s32 0, %v470
      %v472 = vrot.slane %v464, %v471
      %v477 = vunpack.c.l.b16 %v448
      %v478 = vunpack.c.l.b16 %v449
      %v479 = vunpack.c.l.b16 %v450
      %v480 = vunpack.c.l.b16 %v451
      %v481 = vpack.c.b16 %v478, %v477
      %v482 = vpack.c.b16 %v480, %v479
      %vm485 = vcmask 261120
      %v487 = vsel %vm485, %v468, 0
      %489 = vmatprep.subr.bf16.mxu0 0
      %490 = vmatpush1.bf16.msra.mxu0 %v481
      %491 = vmatprep.subr.bf16.mxu0 0
      %492 = vmatpush1.bf16.msra.mxu0 %v482
      %493 = vmatprep.subr.bf16.mxu0 0
      %494 = vmatpush1.bf16.msra.mxu0 0
      %495 = vmatprep.subr.bf16.mxu0 0
      %496 = vmatpush1.bf16.msra.mxu0 0
      %497 = vmatprep.subr.bf16.mxu0 0
      %498 = vmatpush1.bf16.msra.mxu0 0
      %499 = vmatprep.subr.bf16.mxu0 0
      %500 = vmatpush1.bf16.msra.mxu0 0
      %501 = vmatprep.subr.bf16.mxu0 0
      %502 = vmatpush1.bf16.msra.mxu0 0
      %503 = vmatprep.subr.bf16.mxu0 0
      %504 = vmatpush1.bf16.msra.mxu0 0
      %505 = vmatprep.subr.bf16.mxu0 0
      %506 = vmatpush1.bf16.msra.mxu0 0
      %507 = vmatprep.subr.bf16.mxu0 0
      %508 = vmatpush1.bf16.msra.mxu0 0
      %509 = vmatprep.subr.bf16.mxu0 0
      %510 = vmatpush1.bf16.msra.mxu0 0
      %511 = vmatprep.subr.bf16.mxu0 0
      %512 = vmatpush1.bf16.msra.mxu0 0
      %513 = vmatprep.subr.bf16.mxu0 0
      %514 = vmatpush1.bf16.msra.mxu0 0
      %515 = vmatprep.subr.bf16.mxu0 0
      %516 = vmatpush1.bf16.msra.mxu0 0
      %517 = vmatprep.subr.bf16.mxu0 0
      %518 = vmatpush1.bf16.msra.mxu0 0
      %519 = vmatprep.subr.bf16.mxu0 0
      %520 = vmatpush1.bf16.msra.mxu0 0
      %521 = vmatprep.mubr.bf16.mxu0 0
      %522 = vmatmul.mubr.bf16.gmra.mrb[0].mxu0 %v487
      %v523 = vpop.f32.mrb[0].mxu0
      %v524 = vadd.f32 %v472, %v523
      %v525 = vpop.f32.mrb[0].mxu0
      %v526 = vpop.f32.mrb[0].mxu0
      %v527 = vpop.f32.mrb[0].mxu0
      %528 = vdwg.mxu0
      %v529 = vld [vmem:[%s430] sm:$0xf]
      %v530 = vld [vmem:[%s430 + $0x4] sm:$0xf]
      %v531 = vld [vmem:[%s430 + $0x8] sm:$0xf]
      %v532 = vld [vmem:[%s430 + $0xc] sm:$0xf]
      %v533 = vld [vmem:[%s430 + $0x10] sm:$0xf]
      %v534 = vld [vmem:[%s430 + $0x14] sm:$0xf]
      %v535 = vld [vmem:[%s430 + $0x18] sm:$0xf]
      %v536 = vld [vmem:[%s430 + $0x1c] sm:$0xf]
      %v537 = vld [vmem:[%s430 + $0x20] sm:$0xf]
      %v538 = vld [vmem:[%s430 + $0x24] sm:$0xf]
      %v539 = vld [vmem:[%s430 + $0x28] sm:$0xf]
      %v540 = vld [vmem:[%s430 + $0x2c] sm:$0xf]
      %v541 = vld [vmem:[%s430 + $0x30] sm:$0xf]
      %v542 = vld [vmem:[%s430 + $0x34] sm:$0xf]
      %v543 = vld [vmem:[%s430 + $0x38] sm:$0xf]
      %v544 = vld [vmem:[%s430 + $0x3c] sm:$0xf]
      %v545 = vlaneseq
      %v546 = vshrl.u32 %v545, 7
      %v547 = vsub.s32 0, %v546
      %v548 = vrot.slane %v465, %v547
      %v565 = vunpack.c.l.b16 %v529
      %v566 = vunpack.c.l.b16 %v530
      %v567 = vunpack.c.l.b16 %v531
      %v568 = vunpack.c.l.b16 %v532
      %v569 = vunpack.c.l.b16 %v533
      %v570 = vunpack.c.l.b16 %v534
      %v571 = vunpack.c.l.b16 %v535
      %v572 = vunpack.c.l.b16 %v536
      %v573 = vunpack.c.l.b16 %v537
      %v574 = vunpack.c.l.b16 %v538
      %v575 = vunpack.c.l.b16 %v539
      %v576 = vunpack.c.l.b16 %v540
      %v577 = vunpack.c.l.b16 %v541
      %v578 = vunpack.c.l.b16 %v542
      %v579 = vunpack.c.l.b16 %v543
      %v580 = vunpack.c.l.b16 %v544
      %v581 = vpack.c.b16 %v566, %v565
      %v582 = vpack.c.b16 %v568, %v567
      %v583 = vpack.c.b16 %v570, %v569
      %v584 = vpack.c.b16 %v572, %v571
      %v585 = vpack.c.b16 %v574, %v573
      %v586 = vpack.c.b16 %v576, %v575
      %v587 = vpack.c.b16 %v578, %v577
      %v588 = vpack.c.b16 %v580, %v579
      %v593 = vunpack.c.l.b16 %v452
      %v594 = vunpack.c.l.b16 %v453
      %v595 = vunpack.c.l.b16 %v454
      %v596 = vunpack.c.l.b16 %v455
      %v597 = vpack.c.b16 %v594, %v593
      %v598 = vpack.c.b16 %v596, %v595
      %v602 = vsel %vm485, %v581, 0
      %v605 = vsel %vm485, %v582, 0
      %v608 = vsel %vm485, %v583, 0
      %v611 = vsel %vm485, %v584, 0
      %v614 = vsel %vm485, %v585, 0
      %v617 = vsel %vm485, %v586, 0
      %v620 = vsel %vm485, %v587, 0
      %v623 = vsel %vm485, %v588, 0
      %625 = vmatprep.subr.bf16.mxu0 0
      %626 = vmatpush1.bf16.msra.mxu0 %v597
      %627 = vmatprep.subr.bf16.mxu0 0
      %628 = vmatpush1.bf16.msra.mxu0 %v598
      %629 = vmatprep.subr.bf16.mxu0 0
      %630 = vmatpush1.bf16.msra.mxu0 0
      %631 = vmatprep.subr.bf16.mxu0 0
      %632 = vmatpush1.bf16.msra.mxu0 0
      %633 = vmatprep.subr.bf16.mxu0 0
      %634 = vmatpush1.bf16.msra.mxu0 0
      %635 = vmatprep.subr.bf16.mxu0 0
      %636 = vmatpush1.bf16.msra.mxu0 0
      %637 = vmatprep.subr.bf16.mxu0 0
      %638 = vmatpush1.bf16.msra.mxu0 0
      %639 = vmatprep.subr.bf16.mxu0 0
      %640 = vmatpush1.bf16.msra.mxu0 0
      %641 = vmatprep.subr.bf16.mxu0 0
      %642 = vmatpush1.bf16.msra.mxu0 0
      %643 = vmatprep.subr.bf16.mxu0 0
      %644 = vmatpush1.bf16.msra.mxu0 0
      %645 = vmatprep.subr.bf16.mxu0 0
      %646 = vmatpush1.bf16.msra.mxu0 0
      %647 = vmatprep.subr.bf16.mxu0 0
      %648 = vmatpush1.bf16.msra.mxu0 0
      %649 = vmatprep.subr.bf16.mxu0 0
      %650 = vmatpush1.bf16.msra.mxu0 0
      %651 = vmatprep.subr.bf16.mxu0 0
      %652 = vmatpush1.bf16.msra.mxu0 0
      %653 = vmatprep.subr.bf16.mxu0 0
      %654 = vmatpush1.bf16.msra.mxu0 0
      %655 = vmatprep.subr.bf16.mxu0 0
      %656 = vmatpush1.bf16.msra.mxu0 0
      %657 = vmatprep.mubr.bf16.mxu0 0
      %658 = vmatmul.mubr.bf16.gmra.mrb[0].mxu0 %v602
      %v659 = vpop.f32.mrb[0].mxu0
      %v660 = vadd.f32 %v548, %v659
      %v661 = vpop.f32.mrb[0].mxu0
      %v662 = vpop.f32.mrb[0].mxu0
      %v663 = vadd.f32 %v548, %v662
      %v664 = vpop.f32.mrb[0].mxu0
      %665 = vmatprep.mubr.bf16.mxu0 0
      %666 = vmatmul.mubr.bf16.gmra.mrb[0].mxu0 %v605
      %v667 = vpop.f32.mrb[0].mxu0
      %v668 = vadd.f32 %v548, %v667
      %v669 = vpop.f32.mrb[0].mxu0
      %v670 = vpop.f32.mrb[0].mxu0
      %v671 = vadd.f32 %v548, %v670
      %v672 = vpop.f32.mrb[0].mxu0
      %673 = vmatprep.mubr.bf16.mxu0 0
      %674 = vmatmul.mubr.bf16.gmra.mrb[0].mxu0 %v608
      %v675 = vpop.f32.mrb[0].mxu0
      %v676 = vadd.f32 %v548, %v675
      %v677 = vpop.f32.mrb[0].mxu0
      %v678 = vpop.f32.mrb[0].mxu0
      %v679 = vadd.f32 %v548, %v678
      %v680 = vpop.f32.mrb[0].mxu0
      %681 = vmatprep.mubr.bf16.mxu0 0
      %682 = vmatmul.mubr.bf16.gmra.mrb[0].mxu0 %v611
      %v683 = vpop.f32.mrb[0].mxu0
      %v684 = vadd.f32 %v548, %v683
      %v685 = vpop.f32.mrb[0].mxu0
      %v686 = vpop.f32.mrb[0].mxu0
      %v687 = vadd.f32 %v548, %v686
      %v688 = vpop.f32.mrb[0].mxu0
      %689 = vmatprep.mubr.bf16.mxu0 0
      %690 = vmatmul.mubr.bf16.gmra.mrb[0].mxu0 %v614
      %v691 = vpop.f32.mrb[0].mxu0
      %v692 = vadd.f32 %v548, %v691
      %v693 = vpop.f32.mrb[0].mxu0
      %v694 = vpop.f32.mrb[0].mxu0
      %v695 = vadd.f32 %v548, %v694
      %v696 = vpop.f32.mrb[0].mxu0
      %697 = vmatprep.mubr.bf16.mxu0 0
      %698 = vmatmul.mubr.bf16.gmra.mrb[0].mxu0 %v617
      %v699 = vpop.f32.mrb[0].mxu0
      %v700 = vadd.f32 %v548, %v699
      %v701 = vpop.f32.mrb[0].mxu0
      %v702 = vpop.f32.mrb[0].mxu0
      %v703 = vadd.f32 %v548, %v702
      %v704 = vpop.f32.mrb[0].mxu0
      %705 = vmatprep.mubr.bf16.mxu0 0
      %706 = vmatmul.mubr.bf16.gmra.mrb[0].mxu0 %v620
      %v707 = vpop.f32.mrb[0].mxu0
      %v708 = vadd.f32 %v548, %v707
      %v709 = vpop.f32.mrb[0].mxu0
      %v710 = vpop.f32.mrb[0].mxu0
      %v711 = vadd.f32 %v548, %v710
      %v712 = vpop.f32.mrb[0].mxu0
      %713 = vmatprep.mubr.bf16.mxu0 0
      %714 = vmatmul.mubr.bf16.gmra.mrb[0].mxu0 %v623
      %v715 = vpop.f32.mrb[0].mxu0
      %v716 = vadd.f32 %v548, %v715
      %v717 = vpop.f32.mrb[0].mxu0
      %v718 = vpop.f32.mrb[0].mxu0
      %v719 = vadd.f32 %v548, %v718
      %v720 = vpop.f32.mrb[0].mxu0
      %721 = vdwg.mxu0
      %v722 = vld [vmem:[%s435] sm:$0xf]
      %v723 = vld [vmem:[%s435 + $0x4] sm:$0xf]
      %v724 = vld [vmem:[%s435 + $0x8] sm:$0xf]
      %v725 = vld [vmem:[%s435 + $0xc] sm:$0xf]
      %v726 = vld [vmem:[%s435 + $0x10] sm:$0xf]
      %v727 = vld [vmem:[%s435 + $0x14] sm:$0xf]
      %v728 = vld [vmem:[%s435 + $0x18] sm:$0xf]
      %v729 = vld [vmem:[%s435 + $0x1c] sm:$0xf]
      %v730 = vld [vmem:[%s435 + $0x20] sm:$0xf]
      %v731 = vld [vmem:[%s435 + $0x24] sm:$0xf]
      %v732 = vld [vmem:[%s435 + $0x28] sm:$0xf]
      %v733 = vld [vmem:[%s435 + $0x2c] sm:$0xf]
      %v734 = vld [vmem:[%s435 + $0x30] sm:$0xf]
      %v735 = vld [vmem:[%s435 + $0x34] sm:$0xf]
      %v736 = vld [vmem:[%s435 + $0x38] sm:$0xf]
      %v737 = vld [vmem:[%s435 + $0x3c] sm:$0xf]
      %v738 = vlaneseq
      %v739 = vshrl.u32 %v738, 7
      %v740 = vsub.s32 0, %v739
      %v741 = vrot.slane %v466, %v740
      %v758 = vunpack.c.l.b16 %v722
      %v759 = vunpack.c.l.b16 %v723
      %v760 = vunpack.c.l.b16 %v724
      %v761 = vunpack.c.l.b16 %v725
      %v762 = vunpack.c.l.b16 %v726
      %v763 = vunpack.c.l.b16 %v727
      %v764 = vunpack.c.l.b16 %v728
      %v765 = vunpack.c.l.b16 %v729
      %v766 = vunpack.c.l.b16 %v730
      %v767 = vunpack.c.l.b16 %v731
      %v768 = vunpack.c.l.b16 %v732
      %v769 = vunpack.c.l.b16 %v733
      %v770 = vunpack.c.l.b16 %v734
      %v771 = vunpack.c.l.b16 %v735
      %v772 = vunpack.c.l.b16 %v736
      %v773 = vunpack.c.l.b16 %v737
      %v774 = vpack.c.b16 %v759, %v758
      %v775 = vpack.c.b16 %v761, %v760
      %v776 = vpack.c.b16 %v763, %v762
      %v777 = vpack.c.b16 %v765, %v764
      %v778 = vpack.c.b16 %v767, %v766
      %v779 = vpack.c.b16 %v769, %v768
      %v780 = vpack.c.b16 %v771, %v770
      %v781 = vpack.c.b16 %v773, %v772
      %v786 = vunpack.c.l.b16 %v456
      %v787 = vunpack.c.l.b16 %v457
      %v788 = vunpack.c.l.b16 %v458
      %v789 = vunpack.c.l.b16 %v459
      %v790 = vpack.c.b16 %v787, %v786
      %v791 = vpack.c.b16 %v789, %v788
      %v795 = vsel %vm485, %v774, 0
      %v798 = vsel %vm485, %v775, 0
      %v801 = vsel %vm485, %v776, 0
      %v804 = vsel %vm485, %v777, 0
      %v807 = vsel %vm485, %v778, 0
      %v810 = vsel %vm485, %v779, 0
      %v813 = vsel %vm485, %v780, 0
      %v816 = vsel %vm485, %v781, 0
      %818 = vmatprep.subr.bf16.mxu0 0
      %819 = vmatpush1.bf16.msra.mxu0 %v790
      %820 = vmatprep.subr.bf16.mxu0 0
      %821 = vmatpush1.bf16.msra.mxu0 %v791
      %822 = vmatprep.subr.bf16.mxu0 0
      %823 = vmatpush1.bf16.msra.mxu0 0
      %824 = vmatprep.subr.bf16.mxu0 0
      %825 = vmatpush1.bf16.msra.mxu0 0
      %826 = vmatprep.subr.bf16.mxu0 0
      %827 = vmatpush1.bf16.msra.mxu0 0
      %828 = vmatprep.subr.bf16.mxu0 0
      %829 = vmatpush1.bf16.msra.mxu0 0
      %830 = vmatprep.subr.bf16.mxu0 0
      %831 = vmatpush1.bf16.msra.mxu0 0
      %832 = vmatprep.subr.bf16.mxu0 0
      %833 = vmatpush1.bf16.msra.mxu0 0
      %834 = vmatprep.subr.bf16.mxu0 0
      %835 = vmatpush1.bf16.msra.mxu0 0
      %836 = vmatprep.subr.bf16.mxu0 0
      %837 = vmatpush1.bf16.msra.mxu0 0
      %838 = vmatprep.subr.bf16.mxu0 0
      %839 = vmatpush1.bf16.msra.mxu0 0
      %840 = vmatprep.subr.bf16.mxu0 0
      %841 = vmatpush1.bf16.msra.mxu0 0
      %842 = vmatprep.subr.bf16.mxu0 0
      %843 = vmatpush1.bf16.msra.mxu0 0
      %844 = vmatprep.subr.bf16.mxu0 0
      %845 = vmatpush1.bf16.msra.mxu0 0
      %846 = vmatprep.subr.bf16.mxu0 0
      %847 = vmatpush1.bf16.msra.mxu0 0
      %848 = vmatprep.subr.bf16.mxu0 0
      %849 = vmatpush1.bf16.msra.mxu0 0
      %850 = vmatprep.mubr.bf16.mxu0 0
      %851 = vmatmul.mubr.bf16.gmra.mrb[0].mxu0 %v795
      %v852 = vpop.f32.mrb[0].mxu0
      %v853 = vadd.f32 %v741, %v852
      %v854 = vpop.f32.mrb[0].mxu0
      %v855 = vpop.f32.mrb[0].mxu0
      %v856 = vadd.f32 %v741, %v855
      %v857 = vpop.f32.mrb[0].mxu0
      %858 = vmatprep.mubr.bf16.mxu0 0
      %859 = vmatmul.mubr.bf16.gmra.mrb[0].mxu0 %v798
      %v860 = vpop.f32.mrb[0].mxu0
      %v861 = vadd.f32 %v741, %v860
      %v862 = vpop.f32.mrb[0].mxu0
      %v863 = vpop.f32.mrb[0].mxu0
      %v864 = vadd.f32 %v741, %v863
      %v865 = vpop.f32.mrb[0].mxu0
      %866 = vmatprep.mubr.bf16.mxu0 0
      %867 = vmatmul.mubr.bf16.gmra.mrb[0].mxu0 %v801
      %v868 = vpop.f32.mrb[0].mxu0
      %v869 = vadd.f32 %v741, %v868
      %v870 = vpop.f32.mrb[0].mxu0
      %v871 = vpop.f32.mrb[0].mxu0
      %v872 = vadd.f32 %v741, %v871
      %v873 = vpop.f32.mrb[0].mxu0
      %874 = vmatprep.mubr.bf16.mxu0 0
      %875 = vmatmul.mubr.bf16.gmra.mrb[0].mxu0 %v804
      %v876 = vpop.f32.mrb[0].mxu0
      %v877 = vadd.f32 %v741, %v876
      %v878 = vpop.f32.mrb[0].mxu0
      %v879 = vpop.f32.mrb[0].mxu0
      %v880 = vadd.f32 %v741, %v879
      %v881 = vpop.f32.mrb[0].mxu0
      %882 = vmatprep.mubr.bf16.mxu0 0
      %883 = vmatmul.mubr.bf16.gmra.mrb[0].mxu0 %v807
      %v884 = vpop.f32.mrb[0].mxu0
      %v885 = vadd.f32 %v741, %v884
      %v886 = vpop.f32.mrb[0].mxu0
      %v887 = vpop.f32.mrb[0].mxu0
      %v888 = vadd.f32 %v741, %v887
      %v889 = vpop.f32.mrb[0].mxu0
      %890 = vmatprep.mubr.bf16.mxu0 0
      %891 = vmatmul.mubr.bf16.gmra.mrb[0].mxu0 %v810
      %v892 = vpop.f32.mrb[0].mxu0
      %v893 = vadd.f32 %v741, %v892
      %v894 = vpop.f32.mrb[0].mxu0
      %v895 = vpop.f32.mrb[0].mxu0
      %v896 = vadd.f32 %v741, %v895
      %v897 = vpop.f32.mrb[0].mxu0
      %898 = vmatprep.mubr.bf16.mxu0 0
      %899 = vmatmul.mubr.bf16.gmra.mrb[0].mxu0 %v813
      %v900 = vpop.f32.mrb[0].mxu0
      %v901 = vadd.f32 %v741, %v900
      %v902 = vpop.f32.mrb[0].mxu0
      %v903 = vpop.f32.mrb[0].mxu0
      %v904 = vadd.f32 %v741, %v903
      %v905 = vpop.f32.mrb[0].mxu0
      %906 = vmatprep.mubr.bf16.mxu0 0
      %907 = vmatmul.mubr.bf16.gmra.mrb[0].mxu0 %v816
      %v908 = vpop.f32.mrb[0].mxu0
      %v909 = vadd.f32 %v741, %v908
      %v910 = vpop.f32.mrb[0].mxu0
      %v911 = vpop.f32.mrb[0].mxu0
      %v912 = vadd.f32 %v741, %v911
      %v913 = vpop.f32.mrb[0].mxu0
      %914 = vdwg.mxu0
      %v915 = vpack.c.bf16 %v524, %v524
      %v916 = vpack.c.bf16 %v663, %v660
      %v917 = vpack.c.bf16 %v671, %v668
      %v918 = vpack.c.bf16 %v679, %v676
      %v919 = vpack.c.bf16 %v687, %v684
      %v920 = vpack.c.bf16 %v695, %v692
      %v921 = vpack.c.bf16 %v703, %v700
      %v922 = vpack.c.bf16 %v711, %v708
      %v923 = vpack.c.bf16 %v719, %v716
      %v924 = vpack.c.bf16 %v856, %v853
      %v925 = vpack.c.bf16 %v864, %v861
      %v926 = vpack.c.bf16 %v872, %v869
      %v927 = vpack.c.bf16 %v880, %v877
      %v928 = vpack.c.bf16 %v888, %v885
      %v929 = vpack.c.bf16 %v896, %v893
      %v930 = vpack.c.bf16 %v904, %v901
      %v931 = vpack.c.bf16 %v912, %v909
      %v932 = vld [vmem:[%s438] sm:$0x1]
      %v933 = vmul.f32 %v932, -1e+09
      %935 = vrot.lane.b32.xlu0 %v915, 120
      %v936 = vpop.permute.xlu0 %935
      %937 = vrot.lane.b32.xlu0 %v915, 112
      %v938 = vpop.permute.xlu0 %937
      %939 = vrot.lane.b32.xlu0 %v915, 104
      %v940 = vpop.permute.xlu0 %939
      %949 = vrot.lane.b32.xlu0 %v916, 120
      %v950 = vpop.permute.xlu0 %949
      %951 = vrot.lane.b32.xlu0 %v917, 120
      %v952 = vpop.permute.xlu0 %951
      %953 = vrot.lane.b32.xlu0 %v918, 120
      %v954 = vpop.permute.xlu0 %953
      %955 = vrot.lane.b32.xlu0 %v919, 120
      %v956 = vpop.permute.xlu0 %955
      %957 = vrot.lane.b32.xlu0 %v920, 120
      %v958 = vpop.permute.xlu0 %957
      %959 = vrot.lane.b32.xlu0 %v921, 120
      %v960 = vpop.permute.xlu0 %959
      %961 = vrot.lane.b32.xlu0 %v922, 120
      %v962 = vpop.permute.xlu0 %961
      %963 = vrot.lane.b32.xlu0 %v923, 120
      %v964 = vpop.permute.xlu0 %963
      %965 = vrot.lane.b32.xlu0 %v916, 112
      %v966 = vpop.permute.xlu0 %965
      %967 = vrot.lane.b32.xlu0 %v917, 112
      %v968 = vpop.permute.xlu0 %967
      %969 = vrot.lane.b32.xlu0 %v918, 112
      %v970 = vpop.permute.xlu0 %969
      %971 = vrot.lane.b32.xlu0 %v919, 112
      %v972 = vpop.permute.xlu0 %971
      %973 = vrot.lane.b32.xlu0 %v920, 112
      %v974 = vpop.permute.xlu0 %973
      %975 = vrot.lane.b32.xlu0 %v921, 112
      %v976 = vpop.permute.xlu0 %975
      %977 = vrot.lane.b32.xlu0 %v922, 112
      %v978 = vpop.permute.xlu0 %977
      %979 = vrot.lane.b32.xlu0 %v923, 112
      %v980 = vpop.permute.xlu0 %979
      %981 = vrot.lane.b32.xlu0 %v916, 104
      %v982 = vpop.permute.xlu0 %981
      %983 = vrot.lane.b32.xlu0 %v917, 104
      %v984 = vpop.permute.xlu0 %983
      %985 = vrot.lane.b32.xlu0 %v918, 104
      %v986 = vpop.permute.xlu0 %985
      %987 = vrot.lane.b32.xlu0 %v919, 104
      %v988 = vpop.permute.xlu0 %987
      %989 = vrot.lane.b32.xlu0 %v920, 104
      %v990 = vpop.permute.xlu0 %989
      %991 = vrot.lane.b32.xlu0 %v921, 104
      %v992 = vpop.permute.xlu0 %991
      %993 = vrot.lane.b32.xlu0 %v922, 104
      %v994 = vpop.permute.xlu0 %993
      %995 = vrot.lane.b32.xlu0 %v923, 104
      %v996 = vpop.permute.xlu0 %995
      %1005 = vrot.lane.b32.xlu0 %v924, 120
      %v1006 = vpop.permute.xlu0 %1005
      %1007 = vrot.lane.b32.xlu0 %v925, 120
      %v1008 = vpop.permute.xlu0 %1007
      %1009 = vrot.lane.b32.xlu0 %v926, 120
      %v1010 = vpop.permute.xlu0 %1009
      %1011 = vrot.lane.b32.xlu0 %v927, 120
      %v1012 = vpop.permute.xlu0 %1011
      %1013 = vrot.lane.b32.xlu0 %v928, 120
      %v1014 = vpop.permute.xlu0 %1013
      %1015 = vrot.lane.b32.xlu0 %v929, 120
      %v1016 = vpop.permute.xlu0 %1015
      %1017 = vrot.lane.b32.xlu0 %v930, 120
      %v1018 = vpop.permute.xlu0 %1017
      %1019 = vrot.lane.b32.xlu0 %v931, 120
      %v1020 = vpop.permute.xlu0 %1019
      %1029 = vrot.lane.b32.xlu0 %v924, 112
      %v1030 = vpop.permute.xlu0 %1029
      %1031 = vrot.lane.b32.xlu0 %v925, 112
      %v1032 = vpop.permute.xlu0 %1031
      %1033 = vrot.lane.b32.xlu0 %v926, 112
      %v1034 = vpop.permute.xlu0 %1033
      %1035 = vrot.lane.b32.xlu0 %v927, 112
      %v1036 = vpop.permute.xlu0 %1035
      %1037 = vrot.lane.b32.xlu0 %v928, 112
      %v1038 = vpop.permute.xlu0 %1037
      %1039 = vrot.lane.b32.xlu0 %v929, 112
      %v1040 = vpop.permute.xlu0 %1039
      %1041 = vrot.lane.b32.xlu0 %v930, 112
      %v1042 = vpop.permute.xlu0 %1041
      %1043 = vrot.lane.b32.xlu0 %v931, 112
      %v1044 = vpop.permute.xlu0 %1043
      %1053 = vrot.lane.b32.xlu0 %v924, 104
      %v1054 = vpop.permute.xlu0 %1053
      %1055 = vrot.lane.b32.xlu0 %v925, 104
      %v1056 = vpop.permute.xlu0 %1055
      %1057 = vrot.lane.b32.xlu0 %v926, 104
      %v1058 = vpop.permute.xlu0 %1057
      %1059 = vrot.lane.b32.xlu0 %v927, 104
      %v1060 = vpop.permute.xlu0 %1059
      %1061 = vrot.lane.b32.xlu0 %v928, 104
      %v1062 = vpop.permute.xlu0 %1061
      %1063 = vrot.lane.b32.xlu0 %v929, 104
      %v1064 = vpop.permute.xlu0 %1063
      %1065 = vrot.lane.b32.xlu0 %v930, 104
      %v1066 = vpop.permute.xlu0 %1065
      %1067 = vrot.lane.b32.xlu0 %v931, 104
      %v1068 = vpop.permute.xlu0 %1067
      %v1078 = vlaneseq
      %v1079 = vshrl.u32 %v1078, 7
      %v1080 = vsub.s32 0, %v1079
      %v1081 = vrot.slane %v933, %v1080
      %vm1083 = vcmask 64512
      %v1085 = vsel %vm1083, %v915, 0
      %v1088 = vsel %vm1083, %v916, 0
      %v1091 = vsel %vm1083, %v917, 0
      %v1094 = vsel %vm1083, %v918, 0
      %v1097 = vsel %vm1083, %v919, 0
      %v1100 = vsel %vm1083, %v920, 0
      %v1103 = vsel %vm1083, %v921, 0
      %v1106 = vsel %vm1083, %v922, 0
      %v1109 = vsel %vm1083, %v923, 0
      %1111 = vmatprep.subr.bf16.mxu0 0
      %1112 = vmatpush1.bf16.xpose.msra.mxu0 %v1088
      %1113 = vmatprep.subr.bf16.mxu0 0
      %1114 = vmatpush1.bf16.xpose.msra.mxu0 %v1091
      %1115 = vmatprep.subr.bf16.mxu0 0
      %1116 = vmatpush1.bf16.xpose.msra.mxu0 %v1094
      %1117 = vmatprep.subr.bf16.mxu0 0
      %1118 = vmatpush1.bf16.xpose.msra.mxu0 %v1097
      %1119 = vmatprep.subr.bf16.mxu0 0
      %1120 = vmatpush1.bf16.xpose.msra.mxu0 %v1100
      %1121 = vmatprep.subr.bf16.mxu0 0
      %1122 = vmatpush1.bf16.xpose.msra.mxu0 %v1103
      %1123 = vmatprep.subr.bf16.mxu0 0
      %1124 = vmatpush1.bf16.xpose.msra.mxu0 %v1106
      %1125 = vmatprep.subr.bf16.mxu0 0
      %1126 = vmatpush1.bf16.xpose.msra.mxu0 %v1109
      %1127 = vmatprep.subr.bf16.mxu0 0
      %1128 = vmatpush1.bf16.xpose.msra.mxu0 0
      %1129 = vmatprep.subr.bf16.mxu0 0
      %1130 = vmatpush1.bf16.xpose.msra.mxu0 0
      %1131 = vmatprep.subr.bf16.mxu0 0
      %1132 = vmatpush1.bf16.xpose.msra.mxu0 0
      %1133 = vmatprep.subr.bf16.mxu0 0
      %1134 = vmatpush1.bf16.xpose.msra.mxu0 0
      %1135 = vmatprep.subr.bf16.mxu0 0
      %1136 = vmatpush1.bf16.xpose.msra.mxu0 0
      %1137 = vmatprep.subr.bf16.mxu0 0
      %1138 = vmatpush1.bf16.xpose.msra.mxu0 0
      %1139 = vmatprep.subr.bf16.mxu0 0
      %1140 = vmatpush1.bf16.xpose.msra.mxu0 0
      %1141 = vmatprep.subr.bf16.mxu0 0
      %1142 = vmatpush1.bf16.xpose.msra.mxu0 0
      %1143 = vmatprep.mubr.bf16.mxu0 0
      %1144 = vmatmul.mubr.bf16.gmra.mrb[0].mxu0 %v1085
      %v1145 = vpop.f32.mrb[0].mxu0
      %v1146 = vadd.f32 %v1081, %v1145
      %v1147 = vpop.f32.mrb[0].mxu0
      %v1148 = vpop.f32.mrb[0].mxu0
      %v1149 = vpop.f32.mrb[0].mxu0
      %1150 = vdwg.mxu0
      %v1152 = vsel %vm1083, %v936, 0
      %v1155 = vsel %vm1083, %v950, 0
      %v1158 = vsel %vm1083, %v952, 0
      %v1161 = vsel %vm1083, %v954, 0
      %v1164 = vsel %vm1083, %v956, 0
      %v1167 = vsel %vm1083, %v958, 0
      %v1170 = vsel %vm1083, %v960, 0
      %v1173 = vsel %vm1083, %v962, 0
      %v1176 = vsel %vm1083, %v964, 0
      %1178 = vmatprep.subr.bf16.mxu0 0
      %1179 = vmatpush1.bf16.xpose.msra.mxu0 %v1155
      %1180 = vmatprep.subr.bf16.mxu0 0
      %1181 = vmatpush1.bf16.xpose.msra.mxu0 %v1158
      %1182 = vmatprep.subr.bf16.mxu0 0
      %1183 = vmatpush1.bf16.xpose.msra.mxu0 %v1161
      %1184 = vmatprep.subr.bf16.mxu0 0
      %1185 = vmatpush1.bf16.xpose.msra.mxu0 %v1164
      %1186 = vmatprep.subr.bf16.mxu0 0
      %1187 = vmatpush1.bf16.xpose.msra.mxu0 %v1167
      %1188 = vmatprep.subr.bf16.mxu0 0
      %1189 = vmatpush1.bf16.xpose.msra.mxu0 %v1170
      %1190 = vmatprep.subr.bf16.mxu0 0
      %1191 = vmatpush1.bf16.xpose.msra.mxu0 %v1173
      %1192 = vmatprep.subr.bf16.mxu0 0
      %1193 = vmatpush1.bf16.xpose.msra.mxu0 %v1176
      %1194 = vmatprep.subr.bf16.mxu0 0
      %1195 = vmatpush1.bf16.xpose.msra.mxu0 0
      %1196 = vmatprep.subr.bf16.mxu0 0
      %1197 = vmatpush1.bf16.xpose.msra.mxu0 0
      %1198 = vmatprep.subr.bf16.mxu0 0
      %1199 = vmatpush1.bf16.xpose.msra.mxu0 0
      %1200 = vmatprep.subr.bf16.mxu0 0
      %1201 = vmatpush1.bf16.xpose.msra.mxu0 0
      %1202 = vmatprep.subr.bf16.mxu0 0
      %1203 = vmatpush1.bf16.xpose.msra.mxu0 0
      %1204 = vmatprep.subr.bf16.mxu0 0
      %1205 = vmatpush1.bf16.xpose.msra.mxu0 0
      %1206 = vmatprep.subr.bf16.mxu0 0
      %1207 = vmatpush1.bf16.xpose.msra.mxu0 0
      %1208 = vmatprep.subr.bf16.mxu0 0
      %1209 = vmatpush1.bf16.xpose.msra.mxu0 0
      %1210 = vmatprep.mubr.bf16.mxu0 0
      %1211 = vmatmul.mubr.bf16.gmra.mrb[0].mxu0 %v1152
      %v1212 = vpop.f32.mrb[0].mxu0
      %v1213 = vadd.f32 %v1081, %v1212
      %v1214 = vpop.f32.mrb[0].mxu0
      %v1215 = vpop.f32.mrb[0].mxu0
      %v1216 = vpop.f32.mrb[0].mxu0
      %1217 = vdwg.mxu0
      %v1219 = vsel %vm1083, %v938, 0
      %v1222 = vsel %vm1083, %v966, 0
      %v1225 = vsel %vm1083, %v968, 0
      %v1228 = vsel %vm1083, %v970, 0
      %v1231 = vsel %vm1083, %v972, 0
      %v1234 = vsel %vm1083, %v974, 0
      %v1237 = vsel %vm1083, %v976, 0
      %v1240 = vsel %vm1083, %v978, 0
      %v1243 = vsel %vm1083, %v980, 0
      %1245 = vmatprep.subr.bf16.mxu0 0
      %1246 = vmatpush1.bf16.xpose.msra.mxu0 %v1222
      %1247 = vmatprep.subr.bf16.mxu0 0
      %1248 = vmatpush1.bf16.xpose.msra.mxu0 %v1225
      %1249 = vmatprep.subr.bf16.mxu0 0
      %1250 = vmatpush1.bf16.xpose.msra.mxu0 %v1228
      %1251 = vmatprep.subr.bf16.mxu0 0
      %1252 = vmatpush1.bf16.xpose.msra.mxu0 %v1231
      %1253 = vmatprep.subr.bf16.mxu0 0
      %1254 = vmatpush1.bf16.xpose.msra.mxu0 %v1234
      %1255 = vmatprep.subr.bf16.mxu0 0
      %1256 = vmatpush1.bf16.xpose.msra.mxu0 %v1237
      %1257 = vmatprep.subr.bf16.mxu0 0
      %1258 = vmatpush1.bf16.xpose.msra.mxu0 %v1240
      %1259 = vmatprep.subr.bf16.mxu0 0
      %1260 = vmatpush1.bf16.xpose.msra.mxu0 %v1243
      %1261 = vmatprep.subr.bf16.mxu0 0
      %1262 = vmatpush1.bf16.xpose.msra.mxu0 0
      %1263 = vmatprep.subr.bf16.mxu0 0
      %1264 = vmatpush1.bf16.xpose.msra.mxu0 0
      %1265 = vmatprep.subr.bf16.mxu0 0
      %1266 = vmatpush1.bf16.xpose.msra.mxu0 0
      %1267 = vmatprep.subr.bf16.mxu0 0
      %1268 = vmatpush1.bf16.xpose.msra.mxu0 0
      %1269 = vmatprep.subr.bf16.mxu0 0
      %1270 = vmatpush1.bf16.xpose.msra.mxu0 0
      %1271 = vmatprep.subr.bf16.mxu0 0
      %1272 = vmatpush1.bf16.xpose.msra.mxu0 0
      %1273 = vmatprep.subr.bf16.mxu0 0
      %1274 = vmatpush1.bf16.xpose.msra.mxu0 0
      %1275 = vmatprep.subr.bf16.mxu0 0
      %1276 = vmatpush1.bf16.xpose.msra.mxu0 0
      %1277 = vmatprep.mubr.bf16.mxu0 0
      %1278 = vmatmul.mubr.bf16.gmra.mrb[0].mxu0 %v1219
      %v1279 = vpop.f32.mrb[0].mxu0
      %v1280 = vadd.f32 %v1081, %v1279
      %v1281 = vpop.f32.mrb[0].mxu0
      %v1282 = vpop.f32.mrb[0].mxu0
      %v1283 = vpop.f32.mrb[0].mxu0
      %1284 = vdwg.mxu0
      %v1286 = vsel %vm1083, %v940, 0
      %v1289 = vsel %vm1083, %v982, 0
      %v1292 = vsel %vm1083, %v984, 0
      %v1295 = vsel %vm1083, %v986, 0
      %v1298 = vsel %vm1083, %v988, 0
      %v1301 = vsel %vm1083, %v990, 0
      %v1304 = vsel %vm1083, %v992, 0
      %v1307 = vsel %vm1083, %v994, 0
      %v1310 = vsel %vm1083, %v996, 0
      %1312 = vmatprep.subr.bf16.mxu0 0
      %1313 = vmatpush1.bf16.xpose.msra.mxu0 %v1289
      %1314 = vmatprep.subr.bf16.mxu0 0
      %1315 = vmatpush1.bf16.xpose.msra.mxu0 %v1292
      %1316 = vmatprep.subr.bf16.mxu0 0
      %1317 = vmatpush1.bf16.xpose.msra.mxu0 %v1295
      %1318 = vmatprep.subr.bf16.mxu0 0
      %1319 = vmatpush1.bf16.xpose.msra.mxu0 %v1298
      %1320 = vmatprep.subr.bf16.mxu0 0
      %1321 = vmatpush1.bf16.xpose.msra.mxu0 %v1301
      %1322 = vmatprep.subr.bf16.mxu0 0
      %1323 = vmatpush1.bf16.xpose.msra.mxu0 %v1304
      %1324 = vmatprep.subr.bf16.mxu0 0
      %1325 = vmatpush1.bf16.xpose.msra.mxu0 %v1307
      %1326 = vmatprep.subr.bf16.mxu0 0
      %1327 = vmatpush1.bf16.xpose.msra.mxu0 %v1310
      %1328 = vmatprep.subr.bf16.mxu0 0
      %1329 = vmatpush1.bf16.xpose.msra.mxu0 0
      %1330 = vmatprep.subr.bf16.mxu0 0
      %1331 = vmatpush1.bf16.xpose.msra.mxu0 0
      %1332 = vmatprep.subr.bf16.mxu0 0
      %1333 = vmatpush1.bf16.xpose.msra.mxu0 0
      %1334 = vmatprep.subr.bf16.mxu0 0
      %1335 = vmatpush1.bf16.xpose.msra.mxu0 0
      %1336 = vmatprep.subr.bf16.mxu0 0
      %1337 = vmatpush1.bf16.xpose.msra.mxu0 0
      %1338 = vmatprep.subr.bf16.mxu0 0
      %1339 = vmatpush1.bf16.xpose.msra.mxu0 0
      %1340 = vmatprep.subr.bf16.mxu0 0
      %1341 = vmatpush1.bf16.xpose.msra.mxu0 0
      %1342 = vmatprep.subr.bf16.mxu0 0
      %1343 = vmatpush1.bf16.xpose.msra.mxu0 0
      %1344 = vmatprep.mubr.bf16.mxu0 0
      %1345 = vmatmul.mubr.bf16.gmra.mrb[0].mxu0 %v1286
      %v1346 = vpop.f32.mrb[0].mxu0
      %v1347 = vadd.f32 %v1081, %v1346
      %v1348 = vpop.f32.mrb[0].mxu0
      %v1349 = vpop.f32.mrb[0].mxu0
      %v1350 = vpop.f32.mrb[0].mxu0
      %1351 = vdwg.mxu0
      %vm1352 = vcmask 1042432
      %v1353 = vsel %vm1352, %v1146, -inf
      %1354 = vmax.xlane.f32.xlu0 %v1353
      %v1355 = vpop.xlane.xlu0 %1354
      %v1356 = vsel %vm1352, %v1213, -inf
      %1357 = vmax.xlane.f32.xlu0 %v1356
      %v1358 = vpop.xlane.xlu0 %1357
      %v1359 = vsel %vm1352, %v1280, -inf
      %1360 = vmax.xlane.f32.xlu0 %v1359
      %v1361 = vpop.xlane.xlu0 %1360
      %v1362 = vsel %vm1352, %v1347, -inf
      %1363 = vmax.xlane.f32.xlu0 %v1362
      %v1364 = vpop.xlane.xlu0 %1363
      %v1365 = vsub.f32 %v1146, %v1355
      %v1366 = vsub.f32 %v1213, %v1358
      %v1367 = vsub.f32 %v1280, %v1361
      %v1368 = vsub.f32 %v1347, %v1364
      %v1369 = vmul.f32 %v1365, 1.442695
      %v1370 = vpow.pop %v1369
      %v1371 = vmul.f32 %v1366, 1.442695
      %v1372 = vpow.pop %v1371
      %v1373 = vmul.f32 %v1367, 1.442695
      %v1374 = vpow.pop %v1373
      %v1375 = vmul.f32 %v1368, 1.442695
      %v1376 = vpow.pop %v1375
      %v1377 = vsel %vm1352, %v1370, 0.0
      %1378 = vadd.xlane.f32.xlu0 %v1377
      %v1379 = vpop.xlane.xlu0 %1378
      %v1380 = vsel %vm1352, %v1372, 0.0
      %1381 = vadd.xlane.f32.xlu0 %v1380
      %v1382 = vpop.xlane.xlu0 %1381
      %v1383 = vsel %vm1352, %v1374, 0.0
      %1384 = vadd.xlane.f32.xlu0 %v1383
      %v1385 = vpop.xlane.xlu0 %1384
      %v1386 = vsel %vm1352, %v1376, 0.0
      %1387 = vadd.xlane.f32.xlu0 %v1386
      %v1388 = vpop.xlane.xlu0 %1387
      %v1389 = vrcp.pop %v1379
      %v1390 = vrcp.pop %v1382
      %v1391 = vrcp.pop %v1385
      %v1392 = vrcp.pop %v1388
      %v1393 = vmul.f32 %v1370, %v1389
      %v1394 = vmul.f32 %v1372, %v1390
      %v1395 = vmul.f32 %v1374, %v1391
      %v1396 = vmul.f32 %v1376, %v1392
      %v1397 = vpack.c.bf16 %v1393, %v1393
      %v1398 = vpack.c.bf16 %v1394, %v1394
      %v1399 = vpack.c.bf16 %v1395, %v1395
      %v1400 = vpack.c.bf16 %v1396, %v1396
      %1401 = vmatprep.subr.bf16.mxu0 0
      %1402 = vmatpush1.bf16.msra.mxu0 %v924
      %1403 = vmatprep.subr.bf16.mxu0 0
      %1404 = vmatpush1.bf16.msra.mxu0 %v925
      %1405 = vmatprep.subr.bf16.mxu0 0
      %1406 = vmatpush1.bf16.msra.mxu0 %v926
      %1407 = vmatprep.subr.bf16.mxu0 0
      %1408 = vmatpush1.bf16.msra.mxu0 %v927
      %1409 = vmatprep.subr.bf16.mxu0 0
      %1410 = vmatpush1.bf16.msra.mxu0 %v928
      %1411 = vmatprep.subr.bf16.mxu0 0
      %1412 = vmatpush1.bf16.msra.mxu0 %v929
      %1413 = vmatprep.subr.bf16.mxu0 0
      %1414 = vmatpush1.bf16.msra.mxu0 %v930
      %1415 = vmatprep.subr.bf16.mxu0 0
      %1416 = vmatpush1.bf16.msra.mxu0 %v931
      %1417 = vmatprep.subr.bf16.mxu0 0
      %1418 = vmatpush1.bf16.msra.mxu0 0
      %1419 = vmatprep.subr.bf16.mxu0 0
      %1420 = vmatpush1.bf16.msra.mxu0 0
      %1421 = vmatprep.subr.bf16.mxu0 0
      %1422 = vmatpush1.bf16.msra.mxu0 0
      %1423 = vmatprep.subr.bf16.mxu0 0
      %1424 = vmatpush1.bf16.msra.mxu0 0
      %1425 = vmatprep.subr.bf16.mxu0 0
      %1426 = vmatpush1.bf16.msra.mxu0 0
      %1427 = vmatprep.subr.bf16.mxu0 0
      %1428 = vmatpush1.bf16.msra.mxu0 0
      %1429 = vmatprep.subr.bf16.mxu0 0
      %1430 = vmatpush1.bf16.msra.mxu0 0
      %1431 = vmatprep.subr.bf16.mxu0 0
      %1432 = vmatpush1.bf16.msra.mxu0 0
      %1433 = vmatprep.mubr.bf16.mxu0 0
      %1434 = vmatmul.mubr.bf16.gmra.mrb[0].mxu0 %v1397
      %v1435 = vpop.f32.mrb[0].mxu0
      %v1436 = vadd.f32 0.0, %v1435
      %v1437 = vpop.f32.mrb[0].mxu0
      %v1438 = vpop.f32.mrb[0].mxu0
      %v1439 = vpop.f32.mrb[0].mxu0
      %1440 = vdwg.mxu0
      %1441 = vmatprep.subr.bf16.mxu0 0
      %1442 = vmatpush1.bf16.msra.mxu0 %v1006
      %1443 = vmatprep.subr.bf16.mxu0 0
      %1444 = vmatpush1.bf16.msra.mxu0 %v1008
      %1445 = vmatprep.subr.bf16.mxu0 0
      %1446 = vmatpush1.bf16.msra.mxu0 %v1010
      %1447 = vmatprep.subr.bf16.mxu0 0
      %1448 = vmatpush1.bf16.msra.mxu0 %v1012
      %1449 = vmatprep.subr.bf16.mxu0 0
      %1450 = vmatpush1.bf16.msra.mxu0 %v1014
      %1451 = vmatprep.subr.bf16.mxu0 0
      %1452 = vmatpush1.bf16.msra.mxu0 %v1016
      %1453 = vmatprep.subr.bf16.mxu0 0
      %1454 = vmatpush1.bf16.msra.mxu0 %v1018
      %1455 = vmatprep.subr.bf16.mxu0 0
      %1456 = vmatpush1.bf16.msra.mxu0 %v1020
      %1457 = vmatprep.subr.bf16.mxu0 0
      %1458 = vmatpush1.bf16.msra.mxu0 0
      %1459 = vmatprep.subr.bf16.mxu0 0
      %1460 = vmatpush1.bf16.msra.mxu0 0
      %1461 = vmatprep.subr.bf16.mxu0 0
      %1462 = vmatpush1.bf16.msra.mxu0 0
      %1463 = vmatprep.subr.bf16.mxu0 0
      %1464 = vmatpush1.bf16.msra.mxu0 0
      %1465 = vmatprep.subr.bf16.mxu0 0
      %1466 = vmatpush1.bf16.msra.mxu0 0
      %1467 = vmatprep.subr.bf16.mxu0 0
      %1468 = vmatpush1.bf16.msra.mxu0 0
      %1469 = vmatprep.subr.bf16.mxu0 0
      %1470 = vmatpush1.bf16.msra.mxu0 0
      %1471 = vmatprep.subr.bf16.mxu0 0
      %1472 = vmatpush1.bf16.msra.mxu0 0
      %1473 = vmatprep.mubr.bf16.mxu0 0
      %1474 = vmatmul.mubr.bf16.gmra.mrb[0].mxu0 %v1398
      %v1475 = vpop.f32.mrb[0].mxu0
      %v1476 = vadd.f32 0.0, %v1475
      %v1477 = vpop.f32.mrb[0].mxu0
      %v1478 = vpop.f32.mrb[0].mxu0
      %v1479 = vpop.f32.mrb[0].mxu0
      %1480 = vdwg.mxu0
      %1481 = vmatprep.subr.bf16.mxu0 0
      %1482 = vmatpush1.bf16.msra.mxu0 %v1030
      %1483 = vmatprep.subr.bf16.mxu0 0
      %1484 = vmatpush1.bf16.msra.mxu0 %v1032
      %1485 = vmatprep.subr.bf16.mxu0 0
      %1486 = vmatpush1.bf16.msra.mxu0 %v1034
      %1487 = vmatprep.subr.bf16.mxu0 0
      %1488 = vmatpush1.bf16.msra.mxu0 %v1036
      %1489 = vmatprep.subr.bf16.mxu0 0
      %1490 = vmatpush1.bf16.msra.mxu0 %v1038
      %1491 = vmatprep.subr.bf16.mxu0 0
      %1492 = vmatpush1.bf16.msra.mxu0 %v1040
      %1493 = vmatprep.subr.bf16.mxu0 0
      %1494 = vmatpush1.bf16.msra.mxu0 %v1042
      %1495 = vmatprep.subr.bf16.mxu0 0
      %1496 = vmatpush1.bf16.msra.mxu0 %v1044
      %1497 = vmatprep.subr.bf16.mxu0 0
      %1498 = vmatpush1.bf16.msra.mxu0 0
      %1499 = vmatprep.subr.bf16.mxu0 0
      %1500 = vmatpush1.bf16.msra.mxu0 0
      %1501 = vmatprep.subr.bf16.mxu0 0
      %1502 = vmatpush1.bf16.msra.mxu0 0
      %1503 = vmatprep.subr.bf16.mxu0 0
      %1504 = vmatpush1.bf16.msra.mxu0 0
      %1505 = vmatprep.subr.bf16.mxu0 0
      %1506 = vmatpush1.bf16.msra.mxu0 0
      %1507 = vmatprep.subr.bf16.mxu0 0
      %1508 = vmatpush1.bf16.msra.mxu0 0
      %1509 = vmatprep.subr.bf16.mxu0 0
      %1510 = vmatpush1.bf16.msra.mxu0 0
      %1511 = vmatprep.subr.bf16.mxu0 0
      %1512 = vmatpush1.bf16.msra.mxu0 0
      %1513 = vmatprep.mubr.bf16.mxu0 0
      %1514 = vmatmul.mubr.bf16.gmra.mrb[0].mxu0 %v1399
      %v1515 = vpop.f32.mrb[0].mxu0
      %v1516 = vadd.f32 0.0, %v1515
      %v1517 = vpop.f32.mrb[0].mxu0
      %v1518 = vpop.f32.mrb[0].mxu0
      %v1519 = vpop.f32.mrb[0].mxu0
      %1520 = vdwg.mxu0
      %1521 = vmatprep.subr.bf16.mxu0 0
      %1522 = vmatpush1.bf16.msra.mxu0 %v1054
      %1523 = vmatprep.subr.bf16.mxu0 0
      %1524 = vmatpush1.bf16.msra.mxu0 %v1056
      %1525 = vmatprep.subr.bf16.mxu0 0
      %1526 = vmatpush1.bf16.msra.mxu0 %v1058
      %1527 = vmatprep.subr.bf16.mxu0 0
      %1528 = vmatpush1.bf16.msra.mxu0 %v1060
      %1529 = vmatprep.subr.bf16.mxu0 0
      %1530 = vmatpush1.bf16.msra.mxu0 %v1062
      %1531 = vmatprep.subr.bf16.mxu0 0
      %1532 = vmatpush1.bf16.msra.mxu0 %v1064
      %1533 = vmatprep.subr.bf16.mxu0 0
      %1534 = vmatpush1.bf16.msra.mxu0 %v1066
      %1535 = vmatprep.subr.bf16.mxu0 0
      %1536 = vmatpush1.bf16.msra.mxu0 %v1068
      %1537 = vmatprep.subr.bf16.mxu0 0
      %1538 = vmatpush1.bf16.msra.mxu0 0
      %1539 = vmatprep.subr.bf16.mxu0 0
      %1540 = vmatpush1.bf16.msra.mxu0 0
      %1541 = vmatprep.subr.bf16.mxu0 0
      %1542 = vmatpush1.bf16.msra.mxu0 0
      %1543 = vmatprep.subr.bf16.mxu0 0
      %1544 = vmatpush1.bf16.msra.mxu0 0
      %1545 = vmatprep.subr.bf16.mxu0 0
      %1546 = vmatpush1.bf16.msra.mxu0 0
      %1547 = vmatprep.subr.bf16.mxu0 0
      %1548 = vmatpush1.bf16.msra.mxu0 0
      %1549 = vmatprep.subr.bf16.mxu0 0
      %1550 = vmatpush1.bf16.msra.mxu0 0
      %1551 = vmatprep.subr.bf16.mxu0 0
      %1552 = vmatpush1.bf16.msra.mxu0 0
      %1553 = vmatprep.mubr.bf16.mxu0 0
      %1554 = vmatmul.mubr.bf16.gmra.mrb[0].mxu0 %v1400
      %v1555 = vpop.f32.mrb[0].mxu0
      %v1556 = vadd.f32 0.0, %v1555
      %v1557 = vpop.f32.mrb[0].mxu0
      %v1558 = vpop.f32.mrb[0].mxu0
      %v1559 = vpop.f32.mrb[0].mxu0
      %1560 = vdwg.mxu0
      %1562 = vrot.lane.b32.xlu0 %v1476, 8
      %v1563 = vpop.permute.xlu0 %1562
      %1566 = vrot.lane.b32.xlu0 %v1516, 16
      %v1567 = vpop.permute.xlu0 %1566
      %1570 = vrot.lane.b32.xlu0 %v1556, 24
      %v1571 = vpop.permute.xlu0 %1570
      %v1573 = vsel %vm1083, %v1436, %v1563
      %vm1574 = vcmask 130048
      %v1575 = vsel %vm1574, %v1573, %v1567
      %vm1576 = vcmask 195584
      %v1577 = vsel %vm1576, %v1575, %v1571
      %v1578 = vpack.c.bf16 %v1577, %v1577
      %v1580 = vlaneseq
      %v1581 = vshrl.u32 %v1580, 7
      %v1582 = vsub.s32 0, %v1581
      %v1583 = vrot.slane %v467, %v1582
      %v1589 = vunpack.c.l.b16 %v460
      %v1590 = vunpack.c.l.b16 %v461
      %v1591 = vunpack.c.l.b16 %v462
      %v1592 = vunpack.c.l.b16 %v463
      %v1593 = vpack.c.b16 %v1590, %v1589
      %v1594 = vpack.c.b16 %v1592, %v1591
      %v1598 = vsel %vm485, %v1578, 0
      %1600 = vmatprep.subr.bf16.mxu0 0
      %1601 = vmatpush1.bf16.msra.mxu0 %v1593
      %1602 = vmatprep.subr.bf16.mxu0 0
      %1603 = vmatpush1.bf16.msra.mxu0 %v1594
      %1604 = vmatprep.subr.bf16.mxu0 0
      %1605 = vmatpush1.bf16.msra.mxu0 0
      %1606 = vmatprep.subr.bf16.mxu0 0
      %1607 = vmatpush1.bf16.msra.mxu0 0
      %1608 = vmatprep.subr.bf16.mxu0 0
      %1609 = vmatpush1.bf16.msra.mxu0 0
      %1610 = vmatprep.subr.bf16.mxu0 0
      %1611 = vmatpush1.bf16.msra.mxu0 0
      %1612 = vmatprep.subr.bf16.mxu0 0
      %1613 = vmatpush1.bf16.msra.mxu0 0
      %1614 = vmatprep.subr.bf16.mxu0 0
      %1615 = vmatpush1.bf16.msra.mxu0 0
      %1616 = vmatprep.subr.bf16.mxu0 0
      %1617 = vmatpush1.bf16.msra.mxu0 0
      %1618 = vmatprep.subr.bf16.mxu0 0
      %1619 = vmatpush1.bf16.msra.mxu0 0
      %1620 = vmatprep.subr.bf16.mxu0 0
      %1621 = vmatpush1.bf16.msra.mxu0 0
      %1622 = vmatprep.subr.bf16.mxu0 0
      %1623 = vmatpush1.bf16.msra.mxu0 0
      %1624 = vmatprep.subr.bf16.mxu0 0
      %1625 = vmatpush1.bf16.msra.mxu0 0
      %1626 = vmatprep.subr.bf16.mxu0 0
      %1627 = vmatpush1.bf16.msra.mxu0 0
      %1628 = vmatprep.subr.bf16.mxu0 0
      %1629 = vmatpush1.bf16.msra.mxu0 0
      %1630 = vmatprep.subr.bf16.mxu0 0
      %1631 = vmatpush1.bf16.msra.mxu0 0
      %1632 = vmatprep.mubr.bf16.mxu0 0
      %1633 = vmatmul.mubr.bf16.gmra.mrb[0].mxu0 %v1598
      %v1634 = vpop.f32.mrb[0].mxu0
      %v1635 = vadd.f32 %v1583, %v1634
      %v1636 = vpop.f32.mrb[0].mxu0
      %v1637 = vpop.f32.mrb[0].mxu0
      %v1638 = vpop.f32.mrb[0].mxu0
      %1639 = vdwg.mxu0
      %1640 = vst [vmem:[%s442] sm:$0x7] %v1635
      %v1641 = vadd.f32 %v1393, %v1394
      %v1642 = vadd.f32 %v1641, %v1395
      %v1643 = vadd.f32 %v1642, %v1396
      %v1644 = vmul.f32 %v1643, 0.25
      %1645 = vst [vmem:[%s446] sm:$0x7] %v1644
      %p1646 = scmp.lt.s32.totalorder %s23, 1
      %s1647 = scalar_select %p1646, %s23, 1
      %s1648 = smul.addr %s1647, 4
      %s1649 = scalar_lea.vmem %s10, %s1648
      %p1650 = scmp.lt.s32.totalorder %s23, 1
      %s1651 = scalar_select %p1650, %s23, 1
      %s1652 = smul.addr %s1651, 4
      %s1653 = scalar_lea.vmem %s11, %s1652
      // Predicated region
      $region61: #{multihead_attention_global_head.1} parent=59 // pred_check
        %p1654 = pneg %p271
      $region62: #{multihead_attention_global_head.1} parent=59 // pred_check_branch
        %1656 = sbr.rel (%p1654) target = $region64
      $region63: #{multihead_attention_global_head.1} parent=59 // pred_region
        _
      $region64: #{multihead_attention_global_head.1} parent=59 // pred_fallthru
        _
      // Predicated region
      $region65: #{multihead_attention_global_head.1} parent=59 // pred_check
        %p1657 = pneg %p297
      $region66: #{multihead_attention_global_head.1} parent=59 // pred_check_branch
        %1659 = sbr.rel (%p1657) target = $region68
      $region67: #{multihead_attention_global_head.1} parent=59 // pred_region
        _
      $region68: #{multihead_attention_global_head.1} parent=59 // pred_fallthru
        _
    $region60: #{multihead_attention_global_head.1} parent=5 // pred_fallthru
      _
    %p1660 = scmp.le.s32.totalorder 2, %s18
    // Predicated region
    $region69: #{multihead_attention_global_head.1} parent=5 // pred_check
      %p1661 = pneg %p1660
    $region70: #{multihead_attention_global_head.1} parent=5 // pred_check_branch
      %1663 = sbr.rel (%p1661) target = $region72
    $region71: #{multihead_attention_global_head.1} parent=5 // pred_region
      %s1664 = ssub.s32 %s18, 2
      // Predicated region
      $region73: #{multihead_attention_global_head.1} parent=71 // pred_check
        %p1665 = pneg %p277
      $region74: #{multihead_attention_global_head.1} parent=71 // pred_check_branch
        %1667 = sbr.rel (%p1665) target = $region76
      $region75: #{multihead_attention_global_head.1} parent=71 // pred_region
        %p1668 = scmp.lt.s32.totalorder %s24, 1
        %s1669 = scalar_select %p1668, %s24, 1
        %s1670 = smul.addr %s1669, 4
        %s1671 = scalar_lea.vmem %s10, %s1670
      $region76: #{multihead_attention_global_head.1} parent=71 // pred_fallthru
        _
      // Predicated region
      $region77: #{multihead_attention_global_head.1} parent=71 // pred_check
        %p1672 = pneg %p303
      $region78: #{multihead_attention_global_head.1} parent=71 // pred_check_branch
        %1674 = sbr.rel (%p1672) target = $region80
      $region79: #{multihead_attention_global_head.1} parent=71 // pred_region
        %p1675 = scmp.lt.s32.totalorder %s24, 1
        %s1676 = scalar_select %p1675, %s24, 1
        %s1677 = smul.addr %s1676, 4
        %s1678 = scalar_lea.vmem %s11, %s1677
      $region80: #{multihead_attention_global_head.1} parent=71 // pred_fallthru
        _
    $region72: #{multihead_attention_global_head.1} parent=5 // pred_fallthru
      _
  $region6: #{multihead_attention_global_head.1} parent=0 // loop_footer
    %s22 = sadd.s32 1, %s18
  $region7: #{multihead_attention_global_head.1} parent=0 // loop_footer_branch
    %17 = sbr.rel target = $region3
  $region8: #{multihead_attention_global_head.1} parent=0 // loop_exit
    _

</llo_original>
